<compile_context>
chip_gen: v5e
topology: v5e:2x2
jax: 0.10.0
libtpu: 0.0.40
codegen_flags: <defaults>
</compile_context>

<pallas_src>
import math
import numpy as np
import jax
import jax.numpy as jnp
from jax.experimental import pallas as pl
from jax.experimental.pallas import tpu as pltpu


def _round_up(x, m):
    return ((x + m - 1) // m) * m


def _choose_block(requested, total, align):
    """Block size (multiple of `align`) + padded extent (multiple of block).

    Prefers >=2 blocks along the axis when the padded extent allows it, so the
    'parallel' grid axis can be split across v7x's two TensorCores."""
    total_pad0 = _round_up(max(int(total), 1), align)
    blk = max(align, min(_round_up(int(requested), align), total_pad0))
    if total_pad0 // blk < 2 and total_pad0 >= 2 * align:
        blk = max(align, (total_pad0 // 2) // align * align)
    total_pad = _round_up(max(int(total), 1), blk)
    return blk, total_pad


# ---------------------------------------------------------------------------
# Static index precomputation (mirrors the torch helpers; pure Python / numpy)
# ---------------------------------------------------------------------------
def compute_left_right_map_index_np(edge_index, full_matrix=False):
    E = edge_index.shape[1]
    edge_to_idx = {(int(edge_index[0, e]), int(edge_index[1, e])): e
                   for e in range(E)}
    left, right, row, col = [], [], [], []
    for e in range(E):
        s, t = int(edge_index[0, e]), int(edge_index[1, e])
        if s < t or full_matrix:
            assert (t, s) in edge_to_idx, f"missing reverse edge for ({s},{t})"
            left.append(e)
            right.append(edge_to_idx[(t, s)])
            row.append(s)
            col.append(t)
    left_right = np.array([left, right], dtype=np.int32)
    new_edge_index = np.array([row, col], dtype=np.int32)
    if full_matrix:
        assert left_right.shape[1] == E
    else:
        assert left_right.shape[1] == E // 2
    return left_right, new_edge_index


def compute_learnable_diag_laplacian_indices_np(size, edge_index, learned_d, total_d):
    assert np.all(edge_index[0] < edge_index[1])
    row, col = edge_index
    tmpl = np.arange(0, learned_d, dtype=np.int32)[None, :]
    nd_row = (tmpl + total_d * row[:, None]).reshape(1, -1)
    nd_col = (tmpl + total_d * col[:, None]).reshape(1, -1)
    non_diag_indices = np.concatenate([nd_row, nd_col], axis=0)
    diag = np.arange(0, size, dtype=np.int32)
    d_row = (tmpl + total_d * diag[:, None]).reshape(1, -1)
    d_col = (tmpl + total_d * diag[:, None]).reshape(1, -1)
    diag_indices = np.concatenate([d_row, d_col], axis=0)
    return diag_indices, non_diag_indices


# ---------------------------------------------------------------------------
# Kernel A: diag^T (d, N) = (maps^T * maps^T) (d, E) @ onehot (E, N)
# grid = (node blocks [parallel], E blocks [arbitrary reduction]).
# onehot[e, n] = (row[e] == global node n), generated in-kernel, lane-dense.
# ---------------------------------------------------------------------------
def _make_diag_kernel(block_n, block_e, normalised, resident_maps):
    def kernel(rowcol_ref, maps_t_ref, *outs_and_scratch):
        if normalised:
            diag_ref, dsi_ref, acc_ref = outs_and_scratch
        else:
            diag_ref, acc_ref = outs_and_scratch
        i = pl.program_id(0)          # node block (parallel)
        k = pl.program_id(1)          # edge block (reduction)

        @pl.when(k == 0)
        def _init():
            acc_ref[...] = jnp.zeros_like(acc_ref)

        if resident_maps:
            e0 = pl.multiple_of(k * block_e, block_e)
            m = maps_t_ref[:, pl.ds(e0, block_e)]          # (d_pad, be)
        else:
            m = maps_t_ref[...]                            # (d_pad, be)
        rows = rowcol_ref[...]                             # (be, 1) int32
        # onehot[e, n] = (row[e] - i*block_n == n_local); padded rows are -1.
        lane = jax.lax.broadcasted_iota(jnp.int32, (block_e, block_n), 1)
        onehot = (rows - i * block_n == lane).astype(jnp.float32)
        acc_ref[...] += jnp.dot(m * m, onehot,
                                preferred_element_type=jnp.float32)

        @pl.when(k == pl.num_programs(1) - 1)
        def _finalize():
            diag = acc_ref[...]
            if normalised:
                dsi = jax.lax.rsqrt(diag + 1.0)            # augmented=True
                dsi_ref[...] = dsi
                diag_ref[...] = dsi * diag * dsi
            else:
                diag_ref[...] = diag

    return kernel


# ---------------------------------------------------------------------------
# Kernel B: gathered^T (d, 2T) = maps^T (d, E) @ onehot (E, 2T) (stacked
# [left; right] gather, shared RHS build), fused tril math and optional
# normalisation via a lane-dense chunked d^{-1/2} gather.
# grid = (tril blocks [parallel], E blocks [arbitrary reduction]).
# ---------------------------------------------------------------------------
def _make_tril_kernel(block_t, block_e, d_pad, normalised, resident_maps,
                      n_pad, dsi_chunk):
    two_bt = 2 * block_t

    def kernel(*refs):
        if normalised:
            lr_ref, rc_ref, maps_t_ref, dsi_ref, saved_ref, tril_ref, acc_ref = refs
        else:
            lr_ref, maps_t_ref, saved_ref, tril_ref, acc_ref = refs

        k = pl.program_id(1)

        @pl.when(k == 0)
        def _init():
            acc_ref[...] = jnp.zeros_like(acc_ref)

        if resident_maps:
            e0 = pl.multiple_of(k * block_e, block_e)
            m = maps_t_ref[:, pl.ds(e0, block_e)]          # (d_pad, be)
        else:
            e0 = k * block_e
            m = maps_t_ref[...]
        sel = lr_ref[...]                                  # (1, 2bt) int32
        sub = jax.lax.broadcasted_iota(jnp.int32, (block_e, two_bt), 0)
        onehot = (sub == sel - e0).astype(jnp.float32)     # (be, 2bt)
        acc_ref[...] += jnp.dot(m, onehot,
                                preferred_element_type=jnp.float32)

        @pl.when(k == pl.num_programs(1) - 1)
        def _finalize():
            g = acc_ref[...]                               # (d_pad, 2bt)
            left = g[:, :block_t]
            right = g[:, block_t:]
            tril = -left * right
            saved_ref[...] = tril                          # pre-normalisation
            if not normalised:
                tril_ref[...] = tril
            else:
                rc = rc_ref[...]                           # (1, 2bt): [row; col]
                n_chunks = n_pad // dsi_chunk

                def gather_chunk(c, acc):
                    n0 = pl.multiple_of(c * dsi_chunk, dsi_chunk)
                    dsi = dsi_ref[:, pl.ds(n0, dsi_chunk)]            # (d_pad, chunk)
                    sub2 = jax.lax.broadcasted_iota(
                        jnp.int32, (dsi_chunk, two_bt), 0)
                    oh = (sub2 == rc - n0).astype(jnp.float32)
                    return acc + jnp.dot(dsi, oh,
                                         preferred_element_type=jnp.float32)

                zero = jnp.zeros((d_pad, two_bt), jnp.float32)
                if n_chunks == 1:
                    norm = gather_chunk(0, zero)
                else:
                    norm = jax.lax.fori_loop(0, n_chunks, gather_chunk, zero,
                                             unroll=(n_chunks <= 8))
                ln = norm[:, :block_t]
                rn = norm[:, block_t:]
                tril_ref[...] = ln * tril * rn

    return kernel


# ---------------------------------------------------------------------------
# Builder
# ---------------------------------------------------------------------------
class DiagLaplacianBuilderPallas:
    def __init__(self, size, edge_index, d, normalised=False, augmented=True,
                 block_e=2048, block_n=256, block_t=256,
                 maps_resident_limit_bytes=8 << 20):
        assert augmented, "only augmented=True implemented"
        self.size = int(size)
        self.d = int(d)
        self.final_d = int(d)                 # add_hp = add_lp = False
        self.d_pad = _round_up(self.d, 8)     # sublane-aligned
        self.normalised = bool(normalised)

        edge_index = np.asarray(edge_index, dtype=np.int32)
        self.edge_index = edge_index
        self.E = int(edge_index.shape[1])
        self.n_tril = self.E // 2

        self.left_right_idx, self.vertex_tril_idx = \
            compute_left_right_map_index_np(edge_index)
        self.diag_indices, self.tril_indices = \
            compute_learnable_diag_laplacian_indices_np(
                self.size, self.vertex_tril_idx, self.d, self.final_d)

        # Static output sparse index layout (precomputed once).
        triu_indices = self.tril_indices[[1, 0], :]
        self._edge_index_out = jnp.asarray(
            np.concatenate([self.tril_indices, triu_indices, self.diag_indices],
                           axis=1), jnp.int32)

        # ---- tiling: lane axes are multiples of 128, >=2 parallel blocks ----
        self.block_n, self.N_pad = _choose_block(block_n, self.size, 128)
        self.block_t, self.T_pad = _choose_block(block_t, self.n_tril, 128)
        self.block_e = max(128, min(_round_up(block_e, 128),
                                    _round_up(self.E, 128)))
        self.E_pad = _round_up(self.E, self.block_e)
        self.dsi_chunk = math.gcd(self.N_pad, 256)     # 128 or 256, divides N_pad
        self.maps_resident = (self.d_pad * self.E_pad * 4
                              <= maps_resident_limit_bytes)

        # ---- tiny int32 index operands (padding = -1 -> all-zero one-hot) ---
        row_ids = np.full((self.E_pad, 1), -1, np.int32)
        row_ids[:self.E, 0] = edge_index[0]
        self._row_ids = jnp.asarray(row_ids)

        def _blocked_pair(a, b):
            # Block-interleaved row vector: block j holds [a_blockj, b_blockj],
            # so the kernel never needs an in-kernel lane concat.
            ap = np.full(self.T_pad, -1, np.int32); ap[:len(a)] = a
            bp = np.full(self.T_pad, -1, np.int32); bp[:len(b)] = b
            stacked = np.stack([ap.reshape(-1, self.block_t),
                                bp.reshape(-1, self.block_t)], axis=1)
            return jnp.asarray(stacked.reshape(1, -1))          # (1, 2*T_pad)

        left_idx, right_idx = self.left_right_idx
        tril_row, tril_col = self.vertex_tril_idx
        self._lr_cat = _blocked_pair(left_idx, right_idx)
        self._rc_cat = _blocked_pair(tril_row, tril_col) if self.normalised else None

        self._build_calls()
        self._fwd = jax.jit(self._forward_impl)

    @staticmethod
    def _vmem_limit(*component_bytes):
        est = int(sum(int(c) for c in component_bytes))
        # generous headroom, but stay well under v7x's 64 MiB physical VMEM
        return int(min(max(2 * est, 32 << 20), 48 << 20))

    def _build_calls(self):
        dp = self.d_pad
        be, bn, bt = self.block_e, self.block_n, self.block_t
        E_pad, N_pad, T_pad = self.E_pad, self.N_pad, self.T_pad
        e_steps = E_pad // be
        maps_bytes = dp * E_pad * 4

        if self.maps_resident:
            # Constant block index -> fetched from HBM exactly once.
            maps_spec = pl.BlockSpec((dp, E_pad), lambda i, k: (0, 0))
        else:
            # TODO(synk): for huge E, reorder the grid (E outermost) instead of
            # re-streaming maps once per row block.
            maps_spec = pl.BlockSpec((dp, be), lambda i, k: (0, k))

        # ---- call A: diag scatter-add (+ d^{-1/2} when normalised) ----------
        grid_a = (N_pad // bn, e_steps)
        n_out_a = 2 if self.normalised else 1
        if self.normalised:
            out_shape_a = (jax.ShapeDtypeStruct((dp, N_pad), jnp.float32),   # diag^T
                           jax.ShapeDtypeStruct((dp, N_pad), jnp.float32))   # dsi^T
            out_specs_a = (pl.BlockSpec((dp, bn), lambda i, k: (0, i)),
                           pl.BlockSpec((dp, bn), lambda i, k: (0, i)))
        else:
            out_shape_a = jax.ShapeDtypeStruct((dp, N_pad), jnp.float32)
            out_specs_a = pl.BlockSpec((dp, bn), lambda i, k: (0, i))
        cost_a = pl.CostEstimate(
            flops=2 * dp * E_pad * N_pad,
            transcendentals=dp * N_pad if self.normalised else 0,
            bytes_accessed=maps_bytes + grid_a[0] * E_pad * 4
                           + n_out_a * dp * N_pad * 4)
        vmem_a = self._vmem_limit(
            2 * maps_bytes,              # resident maps (double-buffered alloc)
            2 * be * 128 * 4,            # streamed row-id column blocks
            n_out_a * 2 * dp * bn * 4,   # output blocks
            dp * bn * 4,                 # accumulator scratch
            3 * be * bn * 4)             # one-hot / m*m temporaries
        self._diag_call = pl.pallas_call(
            _make_diag_kernel(bn, be, self.normalised, self.maps_resident),
            out_shape=out_shape_a,
            grid=grid_a,
            in_specs=[
                pl.BlockSpec((be, 1), lambda i, k: (k, 0)),     # row ids (column)
                maps_spec,                                      # maps^T
            ],
            out_specs=out_specs_a,
            scratch_shapes=[pltpu.VMEM((dp, bn), jnp.float32)],
            compiler_params=pltpu.CompilerParams(
                dimension_semantics=("parallel", "arbitrary"),
                vmem_limit_bytes=vmem_a),
            cost_estimate=cost_a,
        )

        # ---- call B: stacked left/right gather + fused tril math ------------
        grid_b = (T_pad // bt, e_steps)
        in_specs_b = [pl.BlockSpec((1, 2 * bt), lambda j, k: (0, j))]   # [left;right]
        if self.normalised:
            in_specs_b.append(pl.BlockSpec((1, 2 * bt), lambda j, k: (0, j)))  # [row;col]
        in_specs_b.append(maps_spec)
        if self.normalised:
            in_specs_b.append(pl.BlockSpec((dp, N_pad), lambda j, k: (0, 0)))  # dsi^T resident
        flops_b = 2 * dp * E_pad * 2 * T_pad
        if self.normalised:
            flops_b += 2 * dp * N_pad * 2 * T_pad
        cost_b = pl.CostEstimate(
            flops=flops_b, transcendentals=0,
            bytes_accessed=maps_bytes
                           + (2 if self.normalised else 1) * 2 * T_pad * 4
                           + 2 * dp * T_pad * 4
                           + (dp * N_pad * 4 if self.normalised else 0))
        vmem_b_terms = [2 * maps_bytes,
                        4 * 8 * 2 * bt * 4,        # index row-vector blocks
                        2 * 2 * dp * bt * 4,       # output blocks
                        dp * 2 * bt * 4,           # accumulator scratch
                        3 * be * 2 * bt * 4]       # one-hot temporaries
        if self.normalised:
            vmem_b_terms += [2 * dp * N_pad * 4,   # resident dsi^T
                             3 * self.dsi_chunk * 2 * bt * 4]
        vmem_b = self._vmem_limit(*vmem_b_terms)
        self._tril_call = pl.pallas_call(
            _make_tril_kernel(bt, be, dp, self.normalised, self.maps_resident,
                              N_pad, self.dsi_chunk),
            out_shape=(jax.ShapeDtypeStruct((dp, T_pad), jnp.float32),   # saved^T
                       jax.ShapeDtypeStruct((dp, T_pad), jnp.float32)),  # tril^T
            grid=grid_b,
            in_specs=in_specs_b,
            out_specs=(pl.BlockSpec((dp, bt), lambda j, k: (0, j)),
                       pl.BlockSpec((dp, bt), lambda j, k: (0, j))),
            scratch_shapes=[pltpu.VMEM((dp, 2 * bt), jnp.float32)],
            compiler_params=pltpu.CompilerParams(
                dimension_semantics=("parallel", "arbitrary"),
                vmem_limit_bytes=vmem_b),
            cost_estimate=cost_b,
        )

    def _forward_impl(self, maps):
        # Transposed + padded operand: (d_pad, E_pad), lane axis = edges.
        maps_t = maps.astype(jnp.float32).T
        maps_t = jnp.pad(maps_t, ((0, self.d_pad - self.d),
                                  (0, self.E_pad - self.E)))
        if self.normalised:
            diag_t, dsi_t = self._diag_call(self._row_ids, maps_t)
            saved_t, tril_t = self._tril_call(self._lr_cat, self._rc_cat,
                                              maps_t, dsi_t)
        else:
            diag_t = self._diag_call(self._row_ids, maps_t)
            saved_t, tril_t = self._tril_call(self._lr_cat, maps_t)
        # Back to row-major (entries, d) and drop padding (cheap XLA plumbing).
        diag = diag_t[:self.d, :self.size].T
        tril = tril_t[:self.d, :self.n_tril].T
        saved = saved_t[:self.d, :self.n_tril].T
        tril_flat = tril.reshape(-1)
        weights = jnp.concatenate([tril_flat, tril_flat, diag.reshape(-1)])
        return weights, saved

    def forward(self, maps):
        maps = jnp.asarray(maps, jnp.float32)
        assert maps.ndim == 2 and maps.shape == (self.E, self.d)
        weights, saved_tril = self._fwd(maps)
        return (self._edge_index_out, weights), saved_tril


# ---------------------------------------------------------------------------
# Pure numpy reference for verification
# ---------------------------------------------------------------------------
def _reference_forward(builder, maps):
    maps = np.asarray(maps, np.float64)
    left_idx, right_idx = builder.left_right_idx
    tril_row, tril_col = builder.vertex_tril_idx
    row = builder.edge_index[0]
    left = maps[left_idx]
    right = maps[right_idx]
    tril = -left * right
    saved = tril.copy()
    diag = np.zeros((builder.size, builder.d), np.float64)
    np.add.at(diag, row, maps ** 2)
    if builder.normalised:
        dsi = (diag + 1.0) ** -0.5
        tril = dsi[tril_row] * tril * dsi[tril_col]
        diag = dsi * diag * dsi
    weights = np.concatenate([tril.reshape(-1), tril.reshape(-1), diag.reshape(-1)])
    return weights, saved


# ---------------------------------------------------------------------------
if __name__ == "__main__":
    # Circulant graph: 300 nodes, each connected to its next 3 neighbours.
    # -> 900 undirected edges -> 1800 directed edges, d = 4 restriction maps.
    N, d, k_nb = 300, 4, 3
    src, dst = [], []
    for i in range(N):
        for off in range(1, k_nb + 1):
            j = (i + off) % N
            src += [i, j]
            dst += [j, i]
    edge_index = np.array([src, dst], dtype=np.int32)     # (2, 1800)

    key = jax.random.PRNGKey(0)
    maps = jax.random.normal(key, (edge_index.shape[1], d), dtype=jnp.float32)

    for normalised in (True, False):
        # Modest blocks so the multi-block grids, the E-reduction accumulator,
        # the padding paths and the chunked dsi gather are all exercised.
        builder = DiagLaplacianBuilderPallas(
            N, edge_index, d, normalised=normalised, augmented=True,
            block_e=256, block_n=128, block_t=128)

        (ei_out, weights), saved_tril = builder.forward(maps)
        jax.block_until_ready(weights)
        jax.block_until_ready(saved_tril)

        ref_weights, ref_saved = _reference_forward(builder, np.asarray(maps))
        assert np.allclose(np.asarray(weights), ref_weights, rtol=3e-4, atol=1e-5), \
            f"weights mismatch (normalised={normalised})"
        assert np.allclose(np.asarray(saved_tril), ref_saved, rtol=3e-4, atol=1e-5), \
            f"saved_tril mismatch (normalised={normalised})"
        assert ei_out.shape == (2, 2 * builder.n_tril * d + N * d)

    print("KERNEL_OK")
</pallas_src>

<mosaic_0001>
module attributes {stable_mosaic.version = 11 : i64} {
  func.func @kernel(%arg0: i32, %arg1: i32, %arg2: memref<1x256xi32, #tpu.memory_space<vmem>>, %arg3: memref<1x256xi32, #tpu.memory_space<vmem>>, %arg4: memref<8x2048xf32, #tpu.memory_space<vmem>>, %arg5: memref<8x384xf32, #tpu.memory_space<vmem>>, %arg6: memref<8x128xf32, #tpu.memory_space<vmem>>, %arg7: memref<8x128xf32, #tpu.memory_space<vmem>>, %arg8: memref<8x256xf32, #tpu.memory_space<vmem>>) attributes {dimension_semantics = [#tpu.dimension_semantics<parallel>, #tpu.dimension_semantics<arbitrary>], iteration_bounds = array<i64: 8, 8>, scalar_prefetch = 0 : i64, scratch_operands = 1 : i64, tpu.core_type = #tpu.core_type<tc>, window_params = [{transform_indices = @transform_0, window_bounds = array<i64: 1, 256>}, {transform_indices = @transform_1, window_bounds = array<i64: 1, 256>}, {pipeline_mode = #tpu.pipeline_mode<synchronous>, transform_indices = @transform_2, window_bounds = array<i64: 8, 2048>}, {pipeline_mode = #tpu.pipeline_mode<synchronous>, transform_indices = @transform_3, window_bounds = array<i64: 8, 384>}, {transform_indices = @transform_4, window_bounds = array<i64: 8, 128>}, {transform_indices = @transform_5, window_bounds = array<i64: 8, 128>}]} {
    %c0_i32 = arith.constant 0 : i32
    %0 = arith.cmpi eq, %arg1, %c0_i32 : i32
    %1 = arith.extui %0 : i1 to i32
    %c0_i32_0 = arith.constant 0 : i32
    %2 = arith.cmpi ne, %1, %c0_i32_0 : i32
    scf.if %2 {
      %cst_8 = arith.constant 0.000000e+00 : f32
      %22 = vector.broadcast %cst_8 : f32 to vector<8x256xf32>
      %c0_9 = arith.constant 0 : index
      %c0_10 = arith.constant 0 : index
      %23 = vector.load %arg8[%c0_9, %c0_10] : memref<8x256xf32, #tpu.memory_space<vmem>>, vector<8x256xf32>
      tpu.vector_store %arg8[%c0_9, %c0_10], %22 {strides = array<i32>} : memref<8x256xf32, #tpu.memory_space<vmem>>, vector<8x256xf32>,
    } else {
    }
    %c256_i32 = arith.constant 256 : i32
    %3 = arith.muli %arg1, %c256_i32 : i32
    %4 = tpu.assume_multiple %3, 256 : i32
    %c0 = arith.constant 0 : index
    %5 = arith.index_cast %4 : i32 to index
    %6 = vector.load %arg4[%c0, %5] : memref<8x2048xf32, #tpu.memory_space<vmem>>, vector<8x256xf32>
    %c0_1 = arith.constant 0 : index
    %c0_2 = arith.constant 0 : index
    %7 = vector.load %arg2[%c0_1, %c0_2] : memref<1x256xi32, #tpu.memory_space<vmem>>, vector<1x256xi32>
    %8 = tpu.iota {dimensions = array<i32: 0>} : vector<256x256xi32>
    %9 = vector.broadcast %4 : i32 to vector<1x256xi32>
    %10 = arith.subi %7, %9 : vector<1x256xi32>
    %11 = vector.broadcast %10 : vector<1x256xi32> to vector<256x256xi32>
    %12 = arith.cmpi eq, %8, %11 : vector<256x256xi32>
    %13 = arith.extui %12 : vector<256x256xi1> to vector<256x256xi32>
    %14 = arith.sitofp %13 : vector<256x256xi32> to vector<256x256xf32>
    %c0_3 = arith.constant 0 : index
    %c0_4 = arith.constant 0 : index
    %15 = vector.load %arg8[%c0_3, %c0_4] : memref<8x256xf32, #tpu.memory_space<vmem>>, vector<8x256xf32>
    %cst = arith.constant dense<0.000000e+00> : vector<8x256xf32>
    %16 = tpu.matmul %6, %14, %cst {dimension_numbers = #tpu.dot_dimension_numbers<[1], [0], [0], [1], [0, 0, 1, 1], [], []>} : vector<8x256xf32>, vector<256x256xf32>, vector<8x256xf32> -> vector<8x256xf32>
    %17 = arith.addf %15, %16 : vector<8x256xf32>
    %c0_5 = arith.constant 0 : index
    %c0_6 = arith.constant 0 : index
    %18 = vector.load %arg8[%c0_5, %c0_6] : memref<8x256xf32, #tpu.memory_space<vmem>>, vector<8x256xf32>
    tpu.vector_store %arg8[%c0_5, %c0_6], %17 {strides = array<i32>} : memref<8x256xf32, #tpu.memory_space<vmem>>, vector<8x256xf32>,
    %c7_i32 = arith.constant 7 : i32
    %19 = arith.cmpi eq, %arg1, %c7_i32 : i32
    %20 = arith.extui %19 : i1 to i32
    %c0_i32_7 = arith.constant 0 : i32
    %21 = arith.cmpi ne, %20, %c0_i32_7 : i32
    scf.if %21 {
      %c0_8 = arith.constant 0 : index
      %c0_9 = arith.constant 0 : index
      %22 = vector.load %arg8[%c0_8, %c0_9] : memref<8x256xf32, #tpu.memory_space<vmem>>, vector<8x256xf32>
      %23 = vector.extract_strided_slice %22 {offsets = [0, 0], sizes = [8, 128], strides = [1, 1]} : vector<8x256xf32> to vector<8x128xf32>
      %24 = vector.extract_strided_slice %22 {offsets = [0, 128], sizes = [8, 128], strides = [1, 1]} : vector<8x256xf32> to vector<8x128xf32>
      %cst_10 = arith.constant 0.000000e+00 : f32
      %25 = vector.broadcast %cst_10 : f32 to vector<8x128xf32>
      %26 = arith.subf %25, %23 : vector<8x128xf32>
      %27 = arith.mulf %26, %24 : vector<8x128xf32>
      %c0_11 = arith.constant 0 : index
      %c0_12 = arith.constant 0 : index
      %28 = vector.load %arg6[%c0_11, %c0_12] : memref<8x128xf32, #tpu.memory_space<vmem>>, vector<8x128xf32>
      tpu.vector_store %arg6[%c0_11, %c0_12], %27 {strides = array<i32>} : memref<8x128xf32, #tpu.memory_space<vmem>>, vector<8x128xf32>,
      %c0_13 = arith.constant 0 : index
      %c0_14 = arith.constant 0 : index
      %29 = vector.load %arg3[%c0_13, %c0_14] : memref<1x256xi32, #tpu.memory_space<vmem>>, vector<1x256xi32>
      %cst_15 = arith.constant 0.000000e+00 : f32
      %30 = vector.broadcast %cst_15 : f32 to vector<8x256xf32>
      %c0_i32_16 = arith.constant 0 : i32
      %c128_i32 = arith.constant 128 : i32
      %31 = arith.muli %c0_i32_16, %c128_i32 : i32
      %32 = tpu.assume_multiple %31, 128 : i32
      %c0_17 = arith.constant 0 : index
      %33 = arith.index_cast %32 : i32 to index
      %34 = vector.load %arg5[%c0_17, %33] : memref<8x384xf32, #tpu.memory_space<vmem>>, vector<8x128xf32>
      %35 = tpu.iota {dimensions = array<i32: 0>} : vector<128x256xi32>
      %36 = vector.broadcast %32 : i32 to vector<1x256xi32>
      %37 = arith.subi %29, %36 : vector<1x256xi32>
      %38 = vector.broadcast %37 : vector<1x256xi32> to vector<128x256xi32>
      %39 = arith.cmpi eq, %35, %38 : vector<128x256xi32>
      %40 = arith.extui %39 : vector<128x256xi1> to vector<128x256xi32>
      %41 = arith.sitofp %40 : vector<128x256xi32> to vector<128x256xf32>
      %cst_18 = arith.constant dense<0.000000e+00> : vector<8x256xf32>
      %42 = tpu.matmul %34, %41, %cst_18 {dimension_numbers = #tpu.dot_dimension_numbers<[1], [0], [0], [1], [0, 0, 1, 1], [], []>} : vector<8x128xf32>, vector<128x256xf32>, vector<8x256xf32> -> vector<8x256xf32>
      %43 = arith.addf %30, %42 : vector<8x256xf32>
      %c1_i32 = arith.constant 1 : i32
      %c128_i32_19 = arith.constant 128 : i32
      %44 = arith.muli %c1_i32, %c128_i32_19 : i32
      %45 = tpu.assume_multiple %44, 128 : i32
      %c0_20 = arith.constant 0 : index
      %46 = arith.index_cast %45 : i32 to index
      %47 = vector.load %arg5[%c0_20, %46] : memref<8x384xf32, #tpu.memory_space<vmem>>, vector<8x128xf32>
      %48 = tpu.iota {dimensions = array<i32: 0>} : vector<128x256xi32>
      %49 = vector.broadcast %45 : i32 to vector<1x256xi32>
      %50 = arith.subi %29, %49 : vector<1x256xi32>
      %51 = vector.broadcast %50 : vector<1x256xi32> to vector<128x256xi32>
      %52 = arith.cmpi eq, %48, %51 : vector<128x256xi32>
      %53 = arith.extui %52 : vector<128x256xi1> to vector<128x256xi32>
      %54 = arith.sitofp %53 : vector<128x256xi32> to vector<128x256xf32>
      %cst_21 = arith.constant dense<0.000000e+00> : vector<8x256xf32>
      %55 = tpu.matmul %47, %54, %cst_21 {dimension_numbers = #tpu.dot_dimension_numbers<[1], [0], [0], [1], [0, 0, 1, 1], [], []>} : vector<8x128xf32>, vector<128x256xf32>, vector<8x256xf32> -> vector<8x256xf32>
      %56 = arith.addf %43, %55 : vector<8x256xf32>
      %c2_i32 = arith.constant 2 : i32
      %c128_i32_22 = arith.constant 128 : i32
      %57 = arith.muli %c2_i32, %c128_i32_22 : i32
      %58 = tpu.assume_multiple %57, 128 : i32
      %c0_23 = arith.constant 0 : index
      %59 = arith.index_cast %58 : i32 to index
      %60 = vector.load %arg5[%c0_23, %59] : memref<8x384xf32, #tpu.memory_space<vmem>>, vector<8x128xf32>
      %61 = tpu.iota {dimensions = array<i32: 0>} : vector<128x256xi32>
      %62 = vector.broadcast %58 : i32 to vector<1x256xi32>
      %63 = arith.subi %29, %62 : vector<1x256xi32>
      %64 = vector.broadcast %63 : vector<1x256xi32> to vector<128x256xi32>
      %65 = arith.cmpi eq, %61, %64 : vector<128x256xi32>
      %66 = arith.extui %65 : vector<128x256xi1> to vector<128x256xi32>
      %67 = arith.sitofp %66 : vector<128x256xi32> to vector<128x256xf32>
      %cst_24 = arith.constant dense<0.000000e+00> : vector<8x256xf32>
      %68 = tpu.matmul %60, %67, %cst_24 {dimension_numbers = #tpu.dot_dimension_numbers<[1], [0], [0], [1], [0, 0, 1, 1], [], []>} : vector<8x128xf32>, vector<128x256xf32>, vector<8x256xf32> -> vector<8x256xf32>
      %69 = arith.addf %56, %68 : vector<8x256xf32>
      %c3_i32 = arith.constant 3 : i32
      %70 = vector.extract_strided_slice %69 {offsets = [0, 0], sizes = [8, 128], strides = [1, 1]} : vector<8x256xf32> to vector<8x128xf32>
      %71 = vector.extract_strided_slice %69 {offsets = [0, 128], sizes = [8, 128], strides = [1, 1]} : vector<8x256xf32> to vector<8x128xf32>
      %72 = arith.mulf %70, %27 : vector<8x128xf32>
      %73 = arith.mulf %72, %71 : vector<8x128xf32>
      %c0_25 = arith.constant 0 : index
      %c0_26 = arith.constant 0 : index
      %74 = vector.load %arg7[%c0_25, %c0_26] : memref<8x128xf32, #tpu.memory_space<vmem>>, vector<8x128xf32>
      tpu.vector_store %arg7[%c0_25, %c0_26], %73 {strides = array<i32>} : memref<8x128xf32, #tpu.memory_space<vmem>>, vector<8x128xf32>,
    } else {
    }
    return
  }
  func.func @transform_0(%arg0: i32, %arg1: i32) -> (i32, i32) {
    %c0_i32 = arith.constant 0 : i32
    %c0_i32_0 = arith.constant 0 : i32
    return %c0_i32, %arg0 : i32, i32
  }
  func.func @transform_1(%arg0: i32, %arg1: i32) -> (i32, i32) {
    %c0_i32 = arith.constant 0 : i32
    %c0_i32_0 = arith.constant 0 : i32
    return %c0_i32, %arg0 : i32, i32
  }
  func.func @transform_2(%arg0: i32, %arg1: i32) -> (i32, i32) {
    %c0_i32 = arith.constant 0 : i32
    %c0_i32_0 = arith.constant 0 : i32
    %c0_i32_1 = arith.constant 0 : i32
    return %c0_i32, %c0_i32_0 : i32, i32
  }
  func.func @transform_3(%arg0: i32, %arg1: i32) -> (i32, i32) {
    %c0_i32 = arith.constant 0 : i32
    %c0_i32_0 = arith.constant 0 : i32
    %c0_i32_1 = arith.constant 0 : i32
    return %c0_i32, %c0_i32_0 : i32, i32
  }
  func.func @transform_4(%arg0: i32, %arg1: i32) -> (i32, i32) {
    %c0_i32 = arith.constant 0 : i32
    %c0_i32_0 = arith.constant 0 : i32
    return %c0_i32, %arg0 : i32, i32
  }
  func.func @transform_5(%arg0: i32, %arg1: i32) -> (i32, i32) {
    %c0_i32 = arith.constant 0 : i32
    %c0_i32_0 = arith.constant 0 : i32
    return %c0_i32, %arg0 : i32, i32
  }
}

module attributes {stable_mosaic.version = 11 : i64} {
  func.func @kernel(%arg0: i32, %arg1: i32, %arg2: memref<256x1xi32, #tpu.memory_space<vmem>>, %arg3: memref<8x2048xf32, #tpu.memory_space<vmem>>, %arg4: memref<8x128xf32, #tpu.memory_space<vmem>>, %arg5: memref<8x128xf32, #tpu.memory_space<vmem>>, %arg6: memref<8x128xf32, #tpu.memory_space<vmem>>) attributes {dimension_semantics = [#tpu.dimension_semantics<parallel>, #tpu.dimension_semantics<arbitrary>], iteration_bounds = array<i64: 3, 8>, scalar_prefetch = 0 : i64, scratch_operands = 1 : i64, tpu.core_type = #tpu.core_type<tc>, window_params = [{transform_indices = @transform_0, window_bounds = array<i64: 256, 1>}, {pipeline_mode = #tpu.pipeline_mode<synchronous>, transform_indices = @transform_1, window_bounds = array<i64: 8, 2048>}, {transform_indices = @transform_2, window_bounds = array<i64: 8, 128>}, {transform_indices = @transform_3, window_bounds = array<i64: 8, 128>}]} {
    %c0_i32 = arith.constant 0 : i32
    %0 = arith.cmpi eq, %arg1, %c0_i32 : i32
    %1 = arith.extui %0 : i1 to i32
    %c0_i32_0 = arith.constant 0 : i32
    %2 = arith.cmpi ne, %1, %c0_i32_0 : i32
    scf.if %2 {
      %cst_8 = arith.constant 0.000000e+00 : f32
      %24 = vector.broadcast %cst_8 : f32 to vector<8x128xf32>
      %c0_9 = arith.constant 0 : index
      %c0_10 = arith.constant 0 : index
      %25 = vector.load %arg6[%c0_9, %c0_10] : memref<8x128xf32, #tpu.memory_space<vmem>>, vector<8x128xf32>
      tpu.vector_store %arg6[%c0_9, %c0_10], %24 {strides = array<i32>} : memref<8x128xf32, #tpu.memory_space<vmem>>, vector<8x128xf32>,
    } else {
    }
    %c256_i32 = arith.constant 256 : i32
    %3 = arith.muli %arg1, %c256_i32 : i32
    %4 = tpu.assume_multiple %3, 256 : i32
    %c0 = arith.constant 0 : index
    %5 = arith.index_cast %4 : i32 to index
    %6 = vector.load %arg3[%c0, %5] : memref<8x2048xf32, #tpu.memory_space<vmem>>, vector<8x256xf32>
    %c0_1 = arith.constant 0 : index
    %c0_2 = arith.constant 0 : index
    %7 = vector.load %arg2[%c0_1, %c0_2] : memref<256x1xi32, #tpu.memory_space<vmem>>, vector<256x1xi32>
    %8 = tpu.iota {dimensions = array<i32: 1>} : vector<256x128xi32>
    %c128_i32 = arith.constant 128 : i32
    %9 = arith.muli %arg0, %c128_i32 : i32
    %10 = vector.broadcast %9 : i32 to vector<256x1xi32>
    %11 = arith.subi %7, %10 : vector<256x1xi32>
    %12 = vector.broadcast %11 : vector<256x1xi32> to vector<256x128xi32>
    %13 = arith.cmpi eq, %12, %8 : vector<256x128xi32>
    %14 = arith.extui %13 : vector<256x128xi1> to vector<256x128xi32>
    %15 = arith.sitofp %14 : vector<256x128xi32> to vector<256x128xf32>
    %c0_3 = arith.constant 0 : index
    %c0_4 = arith.constant 0 : index
    %16 = vector.load %arg6[%c0_3, %c0_4] : memref<8x128xf32, #tpu.memory_space<vmem>>, vector<8x128xf32>
    %17 = arith.mulf %6, %6 : vector<8x256xf32>
    %cst = arith.constant dense<0.000000e+00> : vector<8x128xf32>
    %18 = tpu.matmul %17, %15, %cst {dimension_numbers = #tpu.dot_dimension_numbers<[1], [0], [0], [1], [0, 0, 1, 1], [], []>} : vector<8x256xf32>, vector<256x128xf32>, vector<8x128xf32> -> vector<8x128xf32>
    %19 = arith.addf %16, %18 : vector<8x128xf32>
    %c0_5 = arith.constant 0 : index
    %c0_6 = arith.constant 0 : index
    %20 = vector.load %arg6[%c0_5, %c0_6] : memref<8x128xf32, #tpu.memory_space<vmem>>, vector<8x128xf32>
    tpu.vector_store %arg6[%c0_5, %c0_6], %19 {strides = array<i32>} : memref<8x128xf32, #tpu.memory_space<vmem>>, vector<8x128xf32>,
    %c7_i32 = arith.constant 7 : i32
    %21 = arith.cmpi eq, %arg1, %c7_i32 : i32
    %22 = arith.extui %21 : i1 to i32
    %c0_i32_7 = arith.constant 0 : i32
    %23 = arith.cmpi ne, %22, %c0_i32_7 : i32
    scf.if %23 {
      %c0_8 = arith.constant 0 : index
      %c0_9 = arith.constant 0 : index
      %24 = vector.load %arg6[%c0_8, %c0_9] : memref<8x128xf32, #tpu.memory_space<vmem>>, vector<8x128xf32>
      %cst_10 = arith.constant 1.000000e+00 : f32
      %25 = vector.broadcast %cst_10 : f32 to vector<8x128xf32>
      %26 = arith.addf %24, %25 : vector<8x128xf32>
      %27 = math.rsqrt %26 : vector<8x128xf32>
      %c0_11 = arith.constant 0 : index
      %c0_12 = arith.constant 0 : index
      %28 = vector.load %arg5[%c0_11, %c0_12] : memref<8x128xf32, #tpu.memory_space<vmem>>, vector<8x128xf32>
      tpu.vector_store %arg5[%c0_11, %c0_12], %27 {strides = array<i32>} : memref<8x128xf32, #tpu.memory_space<vmem>>, vector<8x128xf32>,
      %29 = arith.mulf %27, %24 : vector<8x128xf32>
      %30 = arith.mulf %29, %27 : vector<8x128xf32>
      %c0_13 = arith.constant 0 : index
      %c0_14 = arith.constant 0 : index
      %31 = vector.load %arg4[%c0_13, %c0_14] : memref<8x128xf32, #tpu.memory_space<vmem>>, vector<8x128xf32>
      tpu.vector_store %arg4[%c0_13, %c0_14], %30 {strides = array<i32>} : memref<8x128xf32, #tpu.memory_space<vmem>>, vector<8x128xf32>,
    } else {
    }
    return
  }
  func.func @transform_0(%arg0: i32, %arg1: i32) -> (i32, i32) {
    %c0_i32 = arith.constant 0 : i32
    %c0_i32_0 = arith.constant 0 : i32
    return %arg1, %c0_i32 : i32, i32
  }
  func.func @transform_1(%arg0: i32, %arg1: i32) -> (i32, i32) {
    %c0_i32 = arith.constant 0 : i32
    %c0_i32_0 = arith.constant 0 : i32
    %c0_i32_1 = arith.constant 0 : i32
    return %c0_i32, %c0_i32_0 : i32, i32
  }
  func.func @transform_2(%arg0: i32, %arg1: i32) -> (i32, i32) {
    %c0_i32 = arith.constant 0 : i32
    %c0_i32_0 = arith.constant 0 : i32
    return %c0_i32, %arg0 : i32, i32
  }
  func.func @transform_3(%arg0: i32, %arg1: i32) -> (i32, i32) {
    %c0_i32 = arith.constant 0 : i32
    %c0_i32_0 = arith.constant 0 : i32
    return %c0_i32, %arg0 : i32, i32
  }
}

</mosaic_0001>

<llo_original>
// kernel: _forward_impl.2
$region0: #{_forward_impl.2}
  #allocation0 [shape = 'u32[]', space=smem, size = 0x4, offset = 0x4, fixed_abs, tag = 'smem constant byte address 0x4 - core index']
  #allocation1 [shape = 'u32[72,128]{1,0:T(1,128)}', space=vmem, size = 0x9000, scoped, tag = 'internal scratch']
  #allocation2 [shape = 'f32[8,128]{1,0:T(8,128)}', space=vmem, size = 0x1000, scoped, tag = 'scratch operand']
  %s0 = inlined_call_operand.hbm [shape: s32[2048,1], index: 0, kind: input, shape index: {}]
  %s1 = inlined_call_operand.vmem [shape: f32[8,2048], index: 1, kind: input, shape index: {}]
  %s2 = inlined_call_operand.vmem [shape: f32[8,384], index: 2, kind: output, shape index: {0}]
  %s3 = inlined_call_operand.vmem [shape: f32[8,384], index: 3, kind: output, shape index: {1}]
  %4 = xla_tuple %s2, %s3
  %s5 = sld [smem:[#allocation0]]
  $region61: #{_forward_impl.2} parent=0
    _
  %s7 = ssub.s32 1, %s5
  %s8 = scalar_select 0, %s7, %s5
  $region1: #{_forward_impl.2} parent=0
    #allocation3 [shape = 'u8[262144]{0}', space=vmem, size = 0x40000, scoped, tag = 'input window, operand 0']
    #allocation4 [shape = 's32[2]{0}', space=sflag, size = 0x8, scoped, tag = 'scoped memory for _forward_impl.2']
    %9 = vsyncpa [#allocation4], 0
    %s10 = scalar_lea.sflag [#allocation4], 1
    %11 = vsyncpa %s10, 0
    loop: start=0, step=1, limit=26
    $region2: #{_forward_impl.2} parent=1 // loop_pre_header
      _
    $region3: #{_forward_impl.2} parent=1 // loop_header
      %s13 = sphi 0, %s17
      %p14 = scmp.ge.s32.totalorder %s13, 26
      %s20 = sphi 0, %s32
      %s21 = sphi 0, %s28
      %s22 = sphi 0, %s20
      %s23 = sphi 0, %s21
      %s24 = sphi 0, %s22
      %s25 = sphi 0, %s23
      %s35 = sphi 0, %s37
      %s38 = sphi 0, %s35
      %s39 = sphi 0, %s38
      %s55 = sphi 0, %s39
      %s59 = sphi 0, %s59
      %s61 = sphi 0, %s59
      %s62 = sphi 0, %s61
      %s76 = sphi 0, %s62
      %s82 = sphi 0, %s84
      %s85 = sphi 0, %s82
      %s86 = sphi 0, %s85
      %s102 = sphi 0, %s86
      %s108 = sphi 0, %s110
      %s111 = sphi 0, %s108
      %s112 = sphi 0, %s111
      %s128 = sphi 0, %s112
    $region4: #{_forward_impl.2} parent=1 // loop_header_branch
      %16 = sbr.rel (%p14) target = $region8
    $region5: #{_forward_impl.2} parent=1 // loop_body
      %s18 = ssub.s32 %s13, 1
      %s19 = ssub.s32 %s13, 2
      %s26 = sadd.s32 1, %s21
      %p27 = scmp.ge.s32.totalorder %s26, 8
      %s28 = scalar_select %p27, 0, %s26
      %s29 = sadd.s32 1, %s20
      %s30 = scalar_select %p27, %s29, %s20
      %p31 = scmp.ge.s32.totalorder %s30, 3
      %s32 = scalar_select %p31, 0, %s30
      %s33 = ssub.s32 %s21, %s28
      %p34 = scmp.eq.s32.totalorder %s33, 0
      %s36 = sadd.s32 %s35, 1
      %s37 = scalar_select %p34, %s35, %s36
      %p40 = pneg %p34
      %p41 = scmp.eq.s32.totalorder %s13, 23
      %p42 = por %p40, %p41
      %p43 = scmp.ne.s32.totalorder %s35, %s38
      %p44 = scmp.eq.s32.totalorder %s13, 0
      %p45 = por %p43, %p44
      %p46 = scmp.ne.s32.totalorder %s35, %s38
      %p47 = scmp.eq.s32.totalorder %s18, 23
      %p48 = por %p46, %p47
      %p49 = scmp.ne.s32.totalorder %s38, %s39
      %p50 = scmp.eq.s32.totalorder %s18, 0
      %p51 = por %p49, %p50
      %p52 = scmp.ne.s32.totalorder %s38, %s39
      %p53 = scmp.eq.s32.totalorder %s19, 23
      %p54 = por %p52, %p53
      %p56 = scmp.ne.s32.totalorder %s39, %s55
      %p57 = scmp.eq.s32.totalorder %s19, 0
      %p58 = por %p56, %p57
      %s60 = sadd.s32 %s59, 1
      %p63 = scmp.eq.s32.totalorder %s13, 23
      %p64 = scmp.ne.s32.totalorder %s59, %s61
      %p65 = scmp.eq.s32.totalorder %s13, 0
      %p66 = por %p64, %p65
      %p67 = scmp.ne.s32.totalorder %s59, %s61
      %p68 = scmp.eq.s32.totalorder %s18, 23
      %p69 = por %p67, %p68
      %p70 = scmp.ne.s32.totalorder %s61, %s62
      %p71 = scmp.eq.s32.totalorder %s18, 0
      %p72 = por %p70, %p71
      %p73 = scmp.ne.s32.totalorder %s61, %s62
      %p74 = scmp.eq.s32.totalorder %s19, 23
      %p75 = por %p73, %p74
      %p77 = scmp.ne.s32.totalorder %s62, %s76
      %p78 = scmp.eq.s32.totalorder %s19, 0
      %p79 = por %p77, %p78
      %s80 = ssub.s32 %s20, %s32
      %p81 = scmp.eq.s32.totalorder %s80, 0
      %s83 = sadd.s32 %s82, 1
      %s84 = scalar_select %p81, %s82, %s83
      %p87 = pneg %p81
      %p88 = scmp.eq.s32.totalorder %s13, 23
      %p89 = por %p87, %p88
      %p90 = scmp.ne.s32.totalorder %s82, %s85
      %p91 = scmp.eq.s32.totalorder %s13, 0
      %p92 = por %p90, %p91
      %p93 = scmp.ne.s32.totalorder %s82, %s85
      %p94 = scmp.eq.s32.totalorder %s18, 23
      %p95 = por %p93, %p94
      %p96 = scmp.ne.s32.totalorder %s85, %s86
      %p97 = scmp.eq.s32.totalorder %s18, 0
      %p98 = por %p96, %p97
      %p99 = scmp.ne.s32.totalorder %s85, %s86
      %p100 = scmp.eq.s32.totalorder %s19, 23
      %p101 = por %p99, %p100
      %p103 = scmp.ne.s32.totalorder %s86, %s102
      %p104 = scmp.eq.s32.totalorder %s19, 0
      %p105 = por %p103, %p104
      %s106 = ssub.s32 %s20, %s32
      %p107 = scmp.eq.s32.totalorder %s106, 0
      %s109 = sadd.s32 %s108, 1
      %s110 = scalar_select %p107, %s108, %s109
      %p113 = pneg %p107
      %p114 = scmp.eq.s32.totalorder %s13, 23
      %p115 = por %p113, %p114
      %p116 = scmp.ne.s32.totalorder %s108, %s111
      %p117 = scmp.eq.s32.totalorder %s13, 0
      %p118 = por %p116, %p117
      %p119 = scmp.ne.s32.totalorder %s108, %s111
      %p120 = scmp.eq.s32.totalorder %s18, 23
      %p121 = por %p119, %p120
      %p122 = scmp.ne.s32.totalorder %s111, %s112
      %p123 = scmp.eq.s32.totalorder %s18, 0
      %p124 = por %p122, %p123
      %p125 = scmp.ne.s32.totalorder %s111, %s112
      %p126 = scmp.eq.s32.totalorder %s19, 23
      %p127 = por %p125, %p126
      %p129 = scmp.ne.s32.totalorder %s112, %s128
      %p130 = scmp.eq.s32.totalorder %s19, 0
      %p131 = por %p129, %p130
      %p132 = scmp.le.s32.totalorder 1, %s13
      %p133 = scmp.lt.s32.totalorder %s13, 25
      %p134 = pnand %p132, %p133
      %p135 = pneg %p134
      // Predicated region
      $region9: #{_forward_impl.2} parent=5 // pred_check
        _
      $region10: #{_forward_impl.2} parent=5 // pred_check_branch
        %137 = sbr.rel (%p134) target = $region12
      $region11: #{_forward_impl.2} parent=5 // pred_region
        %s138 = ssub.s32 %s13, 1
        // Predicated region
        $region13: #{_forward_impl.2} parent=11 // pred_check
          %p139 = pneg %p72
        $region14: #{_forward_impl.2} parent=11 // pred_check_branch
          %141 = sbr.rel (%p139) target = $region16
        $region15: #{_forward_impl.2} parent=11 // pred_region
          _
        $region16: #{_forward_impl.2} parent=11 // pred_fallthru
          _
      $region12: #{_forward_impl.2} parent=5 // pred_fallthru
        _
      %p142 = scmp.lt.s32.totalorder %s13, 24
      // Predicated region
      $region17: #{_forward_impl.2} parent=5 // pred_check
        %p143 = pneg %p142
      $region18: #{_forward_impl.2} parent=5 // pred_check_branch
        %145 = sbr.rel (%p143) target = $region20
      $region19: #{_forward_impl.2} parent=5 // pred_region
        // Predicated region
        $region21: #{_forward_impl.2} parent=19 // pred_check
          %p146 = pneg %p45
        $region22: #{_forward_impl.2} parent=19 // pred_check_branch
          %148 = sbr.rel (%p146) target = $region24
        $region23: #{_forward_impl.2} parent=19 // pred_region
          %s149 = sand.u32 %s35, 1
          %s150 = scalar_lea.sflag [#allocation4], %s149
          %s151 = sand.u32 %s35, 1
          %s152 = smul.addr %s151, 256
          %s153 = scalar_lea.vmem [#allocation3], %s152
          %s154 = smul.u32 32, %s21
          %156 = vsyncadd %s150, 0
          %s157 = smul.addr %s154, 8
          %s158 = scalar_lea.hbm %s0, %s157
          %s159 = sshll.u32 %s158, 4
          %s160 = int_to_ptr.hbm [resolvable:$true] %s159
          %s161 = sshll.u32 %s153, 4
          %s162 = int_to_ptr.vmem [resolvable:$true] %s161
          %167 = dma.hbm_to_vmem [thread:$0]  %s160, 4096, %s162, %s150, 128, 128, 8
        $region24: #{_forward_impl.2} parent=19 // pred_fallthru
          _
      $region20: #{_forward_impl.2} parent=5 // pred_fallthru
        _
      %p168 = scmp.le.s32.totalorder 1, %s13
      %p169 = scmp.lt.s32.totalorder %s13, 25
      %p170 = pnand %p168, %p169
      %p171 = pneg %p170
      // Predicated region
      $region25: #{_forward_impl.2} parent=5 // pred_check
        _
      $region26: #{_forward_impl.2} parent=5 // pred_check_branch
        %173 = sbr.rel (%p170) target = $region28
      $region27: #{_forward_impl.2} parent=5 // pred_region
        %s174 = ssub.s32 %s13, 1
        %s175 = sand.u32 %s38, 1
        %s176 = scalar_lea.sflag [#allocation4], %s175
        %s177 = sand.u32 %s38, 1
        %s178 = smul.addr %s177, 256
        %s179 = scalar_lea.vmem [#allocation3], %s178
        // Predicated region
        $region29: #{_forward_impl.2} parent=27 // pred_check
          %p180 = pneg %p51
        $region30: #{_forward_impl.2} parent=27 // pred_check_branch
          %182 = sbr.rel (%p180) target = $region32
        $region31: #{_forward_impl.2} parent=27 // pred_region
          %184 = dma.done %s176, 4096
        $region32: #{_forward_impl.2} parent=27 // pred_fallthru
          _
        %s185 = sand.u32 %s38, 1
        %s186 = scalar_lea.sflag [#allocation4], %s185
        %s187 = sand.u32 %s38, 1
        %s188 = smul.addr %s187, 256
        %s189 = scalar_lea.vmem [#allocation3], %s188
        %p190 = pneg %p51
        %p191 = pneg %p48
        %p192 = pneg %p72
        %p193 = pneg %p69
        %p194 = pneg %p98
        %p195 = pneg %p95
        %p196 = scmp.lt.s32.totalorder %s22, 2
        %s197 = scalar_select %p196, %s22, 2
        %s198 = smul.addr %s197, 8
        %s199 = scalar_lea.vmem %s2, %s198
        %p200 = pneg %p124
        %p201 = pneg %p121
        %p202 = scmp.lt.s32.totalorder %s22, 2
        %s203 = scalar_select %p202, %s22, 2
        %s204 = smul.addr %s203, 8
        %s205 = scalar_lea.vmem %s3, %s204
        %s206 = smul.u32 32, %s23
        %p207 = scmp.lt.s32.totalorder %s22, 2
        %s208 = scalar_select %p207, %s22, 2
        %s209 = smul.addr %s208, 8
        %s210 = scalar_lea.vmem %s2, %s209
        %p211 = scmp.lt.s32.totalorder %s22, 2
        %s212 = scalar_select %p211, %s22, 2
        %s213 = smul.addr %s212, 8
        %s214 = scalar_lea.vmem %s3, %s213
        %p215 = scmp.eq.s32.totalorder %s23, 0
        // Predicated region
        $region33: #{_forward_impl.2} parent=27 // pred_check
          %p216 = pneg %p215
        $region34: #{_forward_impl.2} parent=27 // pred_check_branch
          %218 = sbr.rel (%p216) target = $region36
        $region35: #{_forward_impl.2} parent=27 // pred_region
          %219 = vst [vmem:[#allocation2] sm:$0xff] 0.0
        $region36: #{_forward_impl.2} parent=27 // pred_fallthru
          _
        %s220 = smul.u32 %s23, 256
        %s221 = sshra.s32 %s220, 7
        %s222 = sand.u32 %s220, 127
        %s223 = smul.addr %s221, 8
        %s224 = scalar_lea.vmem %s1, %s223
        %v225 = vld [vmem:[%s224] sm:$0xff]
        %v226 = vld [vmem:[%s224 + $0x8] sm:$0xff]
        %v227 = vld [vmem:[%s179] sm:$0xff]
        %v228 = vld [vmem:[%s179 + $0x8] sm:$0xff]
        %v229 = vld [vmem:[%s179 + $0x10] sm:$0xff]
        %v230 = vld [vmem:[%s179 + $0x18] sm:$0xff]
        %v231 = vld [vmem:[%s179 + $0x20] sm:$0xff]
        %v232 = vld [vmem:[%s179 + $0x28] sm:$0xff]
        %v233 = vld [vmem:[%s179 + $0x30] sm:$0xff]
        %v234 = vld [vmem:[%s179 + $0x38] sm:$0xff]
        %v235 = vld [vmem:[%s179 + $0x40] sm:$0xff]
        %v236 = vld [vmem:[%s179 + $0x48] sm:$0xff]
        %v237 = vld [vmem:[%s179 + $0x50] sm:$0xff]
        %v238 = vld [vmem:[%s179 + $0x58] sm:$0xff]
        %v239 = vld [vmem:[%s179 + $0x60] sm:$0xff]
        %v240 = vld [vmem:[%s179 + $0x68] sm:$0xff]
        %v241 = vld [vmem:[%s179 + $0x70] sm:$0xff]
        %v242 = vld [vmem:[%s179 + $0x78] sm:$0xff]
        %v243 = vld [vmem:[%s179 + $0x80] sm:$0xff]
        %v244 = vld [vmem:[%s179 + $0x88] sm:$0xff]
        %v245 = vld [vmem:[%s179 + $0x90] sm:$0xff]
        %v246 = vld [vmem:[%s179 + $0x98] sm:$0xff]
        %v247 = vld [vmem:[%s179 + $0xa0] sm:$0xff]
        %v248 = vld [vmem:[%s179 + $0xa8] sm:$0xff]
        %v249 = vld [vmem:[%s179 + $0xb0] sm:$0xff]
        %v250 = vld [vmem:[%s179 + $0xb8] sm:$0xff]
        %v251 = vld [vmem:[%s179 + $0xc0] sm:$0xff]
        %v252 = vld [vmem:[%s179 + $0xc8] sm:$0xff]
        %v253 = vld [vmem:[%s179 + $0xd0] sm:$0xff]
        %v254 = vld [vmem:[%s179 + $0xd8] sm:$0xff]
        %v255 = vld [vmem:[%s179 + $0xe0] sm:$0xff]
        %v256 = vld [vmem:[%s179 + $0xe8] sm:$0xff]
        %v257 = vld [vmem:[%s179 + $0xf0] sm:$0xff]
        %v258 = vld [vmem:[%s179 + $0xf8] sm:$0xff]
        %v259 = vlaneseq
        %v260 = vand.u32 %v259, 127
        %s261 = smul.u32 %s22, 128
        %v262 = vstv %s261
        %v263 = vsub.s32 %v227, %v262
        %v264 = vsub.s32 %v228, %v262
        %v265 = vsub.s32 %v229, %v262
        %v266 = vsub.s32 %v230, %v262
        %v267 = vsub.s32 %v231, %v262
        %v268 = vsub.s32 %v232, %v262
        %v269 = vsub.s32 %v233, %v262
        %v270 = vsub.s32 %v234, %v262
        %v271 = vsub.s32 %v235, %v262
        %v272 = vsub.s32 %v236, %v262
        %v273 = vsub.s32 %v237, %v262
        %v274 = vsub.s32 %v238, %v262
        %v275 = vsub.s32 %v239, %v262
        %v276 = vsub.s32 %v240, %v262
        %v277 = vsub.s32 %v241, %v262
        %v278 = vsub.s32 %v242, %v262
        %v279 = vsub.s32 %v243, %v262
        %v280 = vsub.s32 %v244, %v262
        %v281 = vsub.s32 %v245, %v262
        %v282 = vsub.s32 %v246, %v262
        %v283 = vsub.s32 %v247, %v262
        %v284 = vsub.s32 %v248, %v262
        %v285 = vsub.s32 %v249, %v262
        %v286 = vsub.s32 %v250, %v262
        %v287 = vsub.s32 %v251, %v262
        %v288 = vsub.s32 %v252, %v262
        %v289 = vsub.s32 %v253, %v262
        %v290 = vsub.s32 %v254, %v262
        %v291 = vsub.s32 %v255, %v262
        %v292 = vsub.s32 %v256, %v262
        %v293 = vsub.s32 %v257, %v262
        %v294 = vsub.s32 %v258, %v262
        %295 = vset.pattern.permute.xlu0 0
        %296 = vperm.xlu0 %295, %v263
        %v297 = vpop.permute.xlu0 %296
        %298 = vset.pattern.permute.xlu0 0
        %299 = vperm.xlu0 %298, %v264
        %v300 = vpop.permute.xlu0 %299
        %301 = vset.pattern.permute.xlu0 0
        %302 = vperm.xlu0 %301, %v265
        %v303 = vpop.permute.xlu0 %302
        %304 = vset.pattern.permute.xlu0 0
        %305 = vperm.xlu0 %304, %v266
        %v306 = vpop.permute.xlu0 %305
        %307 = vset.pattern.permute.xlu0 0
        %308 = vperm.xlu0 %307, %v267
        %v309 = vpop.permute.xlu0 %308
        %310 = vset.pattern.permute.xlu0 0
        %311 = vperm.xlu0 %310, %v268
        %v312 = vpop.permute.xlu0 %311
        %313 = vset.pattern.permute.xlu0 0
        %314 = vperm.xlu0 %313, %v269
        %v315 = vpop.permute.xlu0 %314
        %316 = vset.pattern.permute.xlu0 0
        %317 = vperm.xlu0 %316, %v270
        %v318 = vpop.permute.xlu0 %317
        %319 = vset.pattern.permute.xlu0 0
        %320 = vperm.xlu0 %319, %v271
        %v321 = vpop.permute.xlu0 %320
        %322 = vset.pattern.permute.xlu0 0
        %323 = vperm.xlu0 %322, %v272
        %v324 = vpop.permute.xlu0 %323
        %325 = vset.pattern.permute.xlu0 0
        %326 = vperm.xlu0 %325, %v273
        %v327 = vpop.permute.xlu0 %326
        %328 = vset.pattern.permute.xlu0 0
        %329 = vperm.xlu0 %328, %v274
        %v330 = vpop.permute.xlu0 %329
        %331 = vset.pattern.permute.xlu0 0
        %332 = vperm.xlu0 %331, %v275
        %v333 = vpop.permute.xlu0 %332
        %334 = vset.pattern.permute.xlu0 0
        %335 = vperm.xlu0 %334, %v276
        %v336 = vpop.permute.xlu0 %335
        %337 = vset.pattern.permute.xlu0 0
        %338 = vperm.xlu0 %337, %v277
        %v339 = vpop.permute.xlu0 %338
        %340 = vset.pattern.permute.xlu0 0
        %341 = vperm.xlu0 %340, %v278
        %v342 = vpop.permute.xlu0 %341
        %343 = vset.pattern.permute.xlu0 0
        %344 = vperm.xlu0 %343, %v279
        %v345 = vpop.permute.xlu0 %344
        %346 = vset.pattern.permute.xlu0 0
        %347 = vperm.xlu0 %346, %v280
        %v348 = vpop.permute.xlu0 %347
        %349 = vset.pattern.permute.xlu0 0
        %350 = vperm.xlu0 %349, %v281
        %v351 = vpop.permute.xlu0 %350
        %352 = vset.pattern.permute.xlu0 0
        %353 = vperm.xlu0 %352, %v282
        %v354 = vpop.permute.xlu0 %353
        %355 = vset.pattern.permute.xlu0 0
        %356 = vperm.xlu0 %355, %v283
        %v357 = vpop.permute.xlu0 %356
        %358 = vset.pattern.permute.xlu0 0
        %359 = vperm.xlu0 %358, %v284
        %v360 = vpop.permute.xlu0 %359
        %361 = vset.pattern.permute.xlu0 0
        %362 = vperm.xlu0 %361, %v285
        %v363 = vpop.permute.xlu0 %362
        %364 = vset.pattern.permute.xlu0 0
        %365 = vperm.xlu0 %364, %v286
        %v366 = vpop.permute.xlu0 %365
        %367 = vset.pattern.permute.xlu0 0
        %368 = vperm.xlu0 %367, %v287
        %v369 = vpop.permute.xlu0 %368
        %370 = vset.pattern.permute.xlu0 0
        %371 = vperm.xlu0 %370, %v288
        %v372 = vpop.permute.xlu0 %371
        %373 = vset.pattern.permute.xlu0 0
        %374 = vperm.xlu0 %373, %v289
        %v375 = vpop.permute.xlu0 %374
        %376 = vset.pattern.permute.xlu0 0
        %377 = vperm.xlu0 %376, %v290
        %v378 = vpop.permute.xlu0 %377
        %379 = vset.pattern.permute.xlu0 0
        %380 = vperm.xlu0 %379, %v291
        %v381 = vpop.permute.xlu0 %380
        %382 = vset.pattern.permute.xlu0 0
        %383 = vperm.xlu0 %382, %v292
        %v384 = vpop.permute.xlu0 %383
        %385 = vset.pattern.permute.xlu0 0
        %386 = vperm.xlu0 %385, %v293
        %v387 = vpop.permute.xlu0 %386
        %388 = vset.pattern.permute.xlu0 0
        %389 = vperm.xlu0 %388, %v294
        %v390 = vpop.permute.xlu0 %389
        %vm391 = vcmp.eq.s32.totalorder %v297, %v260
        %vm392 = vcmp.eq.s32.totalorder %v300, %v260
        %vm393 = vcmp.eq.s32.totalorder %v303, %v260
        %vm394 = vcmp.eq.s32.totalorder %v306, %v260
        %vm395 = vcmp.eq.s32.totalorder %v309, %v260
        %vm396 = vcmp.eq.s32.totalorder %v312, %v260
        %vm397 = vcmp.eq.s32.totalorder %v315, %v260
        %vm398 = vcmp.eq.s32.totalorder %v318, %v260
        %vm399 = vcmp.eq.s32.totalorder %v321, %v260
        %vm400 = vcmp.eq.s32.totalorder %v324, %v260
        %vm401 = vcmp.eq.s32.totalorder %v327, %v260
        %vm402 = vcmp.eq.s32.totalorder %v330, %v260
        %vm403 = vcmp.eq.s32.totalorder %v333, %v260
        %vm404 = vcmp.eq.s32.totalorder %v336, %v260
        %vm405 = vcmp.eq.s32.totalorder %v339, %v260
        %vm406 = vcmp.eq.s32.totalorder %v342, %v260
        %vm407 = vcmp.eq.s32.totalorder %v345, %v260
        %vm408 = vcmp.eq.s32.totalorder %v348, %v260
        %vm409 = vcmp.eq.s32.totalorder %v351, %v260
        %vm410 = vcmp.eq.s32.totalorder %v354, %v260
        %vm411 = vcmp.eq.s32.totalorder %v357, %v260
        %vm412 = vcmp.eq.s32.totalorder %v360, %v260
        %vm413 = vcmp.eq.s32.totalorder %v363, %v260
        %vm414 = vcmp.eq.s32.totalorder %v366, %v260
        %vm415 = vcmp.eq.s32.totalorder %v369, %v260
        %vm416 = vcmp.eq.s32.totalorder %v372, %v260
        %vm417 = vcmp.eq.s32.totalorder %v375, %v260
        %vm418 = vcmp.eq.s32.totalorder %v378, %v260
        %vm419 = vcmp.eq.s32.totalorder %v381, %v260
        %vm420 = vcmp.eq.s32.totalorder %v384, %v260
        %vm421 = vcmp.eq.s32.totalorder %v387, %v260
        %vm422 = vcmp.eq.s32.totalorder %v390, %v260
        %v423 = vsel %vm391, 1, 0
        %v424 = vsel %vm392, 1, 0
        %v425 = vsel %vm393, 1, 0
        %v426 = vsel %vm394, 1, 0
        %v427 = vsel %vm395, 1, 0
        %v428 = vsel %vm396, 1, 0
        %v429 = vsel %vm397, 1, 0
        %v430 = vsel %vm398, 1, 0
        %v431 = vsel %vm399, 1, 0
        %v432 = vsel %vm400, 1, 0
        %v433 = vsel %vm401, 1, 0
        %v434 = vsel %vm402, 1, 0
        %v435 = vsel %vm403, 1, 0
        %v436 = vsel %vm404, 1, 0
        %v437 = vsel %vm405, 1, 0
        %v438 = vsel %vm406, 1, 0
        %v439 = vsel %vm407, 1, 0
        %v440 = vsel %vm408, 1, 0
        %v441 = vsel %vm409, 1, 0
        %v442 = vsel %vm410, 1, 0
        %v443 = vsel %vm411, 1, 0
        %v444 = vsel %vm412, 1, 0
        %v445 = vsel %vm413, 1, 0
        %v446 = vsel %vm414, 1, 0
        %v447 = vsel %vm415, 1, 0
        %v448 = vsel %vm416, 1, 0
        %v449 = vsel %vm417, 1, 0
        %v450 = vsel %vm418, 1, 0
        %v451 = vsel %vm419, 1, 0
        %v452 = vsel %vm420, 1, 0
        %v453 = vsel %vm421, 1, 0
        %v454 = vsel %vm422, 1, 0
        %v455 = vcvt.s32.f32 %v423
        %v456 = vcvt.s32.f32 %v424
        %v457 = vcvt.s32.f32 %v425
        %v458 = vcvt.s32.f32 %v426
        %v459 = vcvt.s32.f32 %v427
        %v460 = vcvt.s32.f32 %v428
        %v461 = vcvt.s32.f32 %v429
        %v462 = vcvt.s32.f32 %v430
        %v463 = vcvt.s32.f32 %v431
        %v464 = vcvt.s32.f32 %v432
        %v465 = vcvt.s32.f32 %v433
        %v466 = vcvt.s32.f32 %v434
        %v467 = vcvt.s32.f32 %v435
        %v468 = vcvt.s32.f32 %v436
        %v469 = vcvt.s32.f32 %v437
        %v470 = vcvt.s32.f32 %v438
        %v471 = vcvt.s32.f32 %v439
        %v472 = vcvt.s32.f32 %v440
        %v473 = vcvt.s32.f32 %v441
        %v474 = vcvt.s32.f32 %v442
        %v475 = vcvt.s32.f32 %v443
        %v476 = vcvt.s32.f32 %v444
        %v477 = vcvt.s32.f32 %v445
        %v478 = vcvt.s32.f32 %v446
        %v479 = vcvt.s32.f32 %v447
        %v480 = vcvt.s32.f32 %v448
        %v481 = vcvt.s32.f32 %v449
        %v482 = vcvt.s32.f32 %v450
        %v483 = vcvt.s32.f32 %v451
        %v484 = vcvt.s32.f32 %v452
        %v485 = vcvt.s32.f32 %v453
        %v486 = vcvt.s32.f32 %v454
        %v487 = vld [vmem:[#allocation2] sm:$0xff]
        %v488 = vmul.f32 %v225, %v225
        %v489 = vmul.f32 %v226, %v226
        %490 = vmatpush.msra.mxu0 %v470
        %491 = vmatpush.msra.mxu0 %v469
        %492 = vmatpush.msra.mxu0 %v468
        %493 = vmatpush.msra.mxu0 %v467
        %494 = vmatpush.msra.mxu0 %v466
        %495 = vmatpush.msra.mxu0 %v465
        %496 = vmatpush.msra.mxu0 %v464
        %497 = vmatpush.msra.mxu0 %v463
        %498 = vmatpush.msra.mxu0 %v462
        %499 = vmatpush.msra.mxu0 %v461
        %500 = vmatpush.msra.mxu0 %v460
        %501 = vmatpush.msra.mxu0 %v459
        %502 = vmatpush.msra.mxu0 %v458
        %503 = vmatpush.msra.mxu0 %v457
        %504 = vmatpush.msra.mxu0 %v456
        %505 = vmatpush.msra.mxu0 %v455
        %506 = vmatmul.f32.gmra.mxu0 %v488
        %v507 = vpop.f32.mrf.mxu0
        %v508 = vadd.f32 0.0, %v507
        %509 = vdwg.mxu0
        %510 = vmatpush.msra.mxu0 %v486
        %511 = vmatpush.msra.mxu0 %v485
        %512 = vmatpush.msra.mxu0 %v484
        %513 = vmatpush.msra.mxu0 %v483
        %514 = vmatpush.msra.mxu0 %v482
        %515 = vmatpush.msra.mxu0 %v481
        %516 = vmatpush.msra.mxu0 %v480
        %517 = vmatpush.msra.mxu0 %v479
        %518 = vmatpush.msra.mxu0 %v478
        %519 = vmatpush.msra.mxu0 %v477
        %520 = vmatpush.msra.mxu0 %v476
        %521 = vmatpush.msra.mxu0 %v475
        %522 = vmatpush.msra.mxu0 %v474
        %523 = vmatpush.msra.mxu0 %v473
        %524 = vmatpush.msra.mxu0 %v472
        %525 = vmatpush.msra.mxu0 %v471
        %526 = vmatmul.f32.gmra.mxu0 %v489
        %v527 = vpop.f32.mrf.mxu0
        %v528 = vadd.f32 %v508, %v527
        %529 = vdwg.mxu0
        %v530 = vadd.f32 %v487, %v528
        %531 = vst [vmem:[#allocation2] sm:$0xff] %v530
        %p532 = scmp.eq.s32.totalorder %s23, 7
        // Predicated region
        $region37: #{_forward_impl.2} parent=27 // pred_check
          %p533 = pneg %p532
        $region38: #{_forward_impl.2} parent=27 // pred_check_branch
          %535 = sbr.rel (%p533) target = $region40
        $region39: #{_forward_impl.2} parent=27 // pred_region
          %v536 = vld [vmem:[#allocation2] sm:$0xff]
          %v537 = vadd.f32 %v536, 1.0
          %v538 = vrsqrt.pop %v537
          %v539 = vmul.f32 %v538, %v537
          %v540 = vmul.f32 %v539, %v538
          %v541 = vmul.f32 0.5, %v540
          %v542 = vsub.f32 1.5, %v541
          %v543 = vmul.f32 %v538, %v542
          %vm544 = vweird.f32 %v537
          %vm545 = vweird.f32 %v538
          %vm546 = vmor %vm544, %vm545
          %v547 = vsel %vm546, %v538, %v543
          %548 = vst [vmem:[%s214] sm:$0xff] %v547
          %v549 = vmul.f32 %v547, %v536
          %v550 = vmul.f32 %v549, %v547
          %551 = vst [vmem:[%s210] sm:$0xff] %v550
        $region40: #{_forward_impl.2} parent=27 // pred_fallthru
          _
        %p552 = scmp.lt.s32.totalorder %s22, 2
        %s553 = scalar_select %p552, %s22, 2
        %s554 = smul.addr %s553, 8
        %s555 = scalar_lea.vmem %s2, %s554
        %p556 = scmp.lt.s32.totalorder %s22, 2
        %s557 = scalar_select %p556, %s22, 2
        %s558 = smul.addr %s557, 8
        %s559 = scalar_lea.vmem %s3, %s558
        // Predicated region
        $region41: #{_forward_impl.2} parent=27 // pred_check
          %p560 = pneg %p95
        $region42: #{_forward_impl.2} parent=27 // pred_check_branch
          %562 = sbr.rel (%p560) target = $region44
        $region43: #{_forward_impl.2} parent=27 // pred_region
          _
        $region44: #{_forward_impl.2} parent=27 // pred_fallthru
          _
        // Predicated region
        $region45: #{_forward_impl.2} parent=27 // pred_check
          %p563 = pneg %p121
        $region46: #{_forward_impl.2} parent=27 // pred_check_branch
          %565 = sbr.rel (%p563) target = $region48
        $region47: #{_forward_impl.2} parent=27 // pred_region
          _
        $region48: #{_forward_impl.2} parent=27 // pred_fallthru
          _
      $region28: #{_forward_impl.2} parent=5 // pred_fallthru
        _
      %p566 = scmp.le.s32.totalorder 2, %s13
      // Predicated region
      $region49: #{_forward_impl.2} parent=5 // pred_check
        %p567 = pneg %p566
      $region50: #{_forward_impl.2} parent=5 // pred_check_branch
        %569 = sbr.rel (%p567) target = $region52
      $region51: #{_forward_impl.2} parent=5 // pred_region
        %s570 = ssub.s32 %s13, 2
        // Predicated region
        $region53: #{_forward_impl.2} parent=51 // pred_check
          %p571 = pneg %p101
        $region54: #{_forward_impl.2} parent=51 // pred_check_branch
          %573 = sbr.rel (%p571) target = $region56
        $region55: #{_forward_impl.2} parent=51 // pred_region
          %p574 = scmp.lt.s32.totalorder %s24, 2
          %s575 = scalar_select %p574, %s24, 2
          %s576 = smul.addr %s575, 8
          %s577 = scalar_lea.vmem %s2, %s576
        $region56: #{_forward_impl.2} parent=51 // pred_fallthru
          _
        // Predicated region
        $region57: #{_forward_impl.2} parent=51 // pred_check
          %p578 = pneg %p127
        $region58: #{_forward_impl.2} parent=51 // pred_check_branch
          %580 = sbr.rel (%p578) target = $region60
        $region59: #{_forward_impl.2} parent=51 // pred_region
          %p581 = scmp.lt.s32.totalorder %s24, 2
          %s582 = scalar_select %p581, %s24, 2
          %s583 = smul.addr %s582, 8
          %s584 = scalar_lea.vmem %s3, %s583
        $region60: #{_forward_impl.2} parent=51 // pred_fallthru
          _
      $region52: #{_forward_impl.2} parent=5 // pred_fallthru
        _
    $region6: #{_forward_impl.2} parent=1 // loop_footer
      %s17 = sadd.s32 1, %s13
    $region7: #{_forward_impl.2} parent=1 // loop_footer_branch
      %12 = sbr.rel target = $region3
    $region8: #{_forward_impl.2} parent=1 // loop_exit
      _
    %585 = vsyncpa [#allocation4], 1
    %s586 = scalar_lea.sflag [#allocation4], 1
    %587 = vsyncpa %s586, 1

// kernel: _forward_impl.3
$region0: #{_forward_impl.3}
  #allocation0 [shape = 'u32[]', space=smem, size = 0x4, offset = 0x4, fixed_abs, tag = 'smem constant byte address 0x4 - core index']
  #allocation1 [shape = 'u32[72,128]{1,0:T(1,128)}', space=vmem, size = 0x9000, scoped, tag = 'internal scratch']
  #allocation2 [shape = 'f32[8,256]{1,0:T(8,128)}', space=vmem, size = 0x2000, scoped, tag = 'scratch operand']
  %s0 = inlined_call_operand.vmem [shape: s32[1,2048], index: 0, kind: input, shape index: {}]
  %s1 = inlined_call_operand.vmem [shape: s32[1,2048], index: 1, kind: input, shape index: {}]
  %s2 = inlined_call_operand.vmem [shape: f32[8,2048], index: 2, kind: input, shape index: {}]
  %s3 = inlined_call_operand.vmem [shape: f32[8,384], index: 3, kind: input, shape index: {}]
  %s4 = inlined_call_operand.vmem [shape: f32[8,1024], index: 4, kind: output, shape index: {0}]
  %s5 = inlined_call_operand.vmem [shape: f32[8,1024], index: 5, kind: output, shape index: {1}]
  %6 = xla_tuple %s4, %s5
  %s7 = sld [smem:[#allocation0]]
  $region65: #{_forward_impl.3} parent=0
    _
  %s9 = ssub.s32 1, %s7
  %s10 = scalar_select 0, %s9, %s7
  loop: start=0, step=1, limit=66
  $region2: #{_forward_impl.3} parent=0 // loop_pre_header
    _
  $region3: #{_forward_impl.3} parent=0 // loop_header
    %s12 = sphi 0, %s16
    %p13 = scmp.ge.s32.totalorder %s12, 66
    %s19 = sphi 0, %s31
    %s20 = sphi 0, %s27
    %s21 = sphi 0, %s19
    %s22 = sphi 0, %s20
    %s23 = sphi 0, %s21
    %s24 = sphi 0, %s22
    %s34 = sphi 0, %s36
    %s37 = sphi 0, %s34
    %s38 = sphi 0, %s37
    %s54 = sphi 0, %s38
    %s60 = sphi 0, %s62
    %s63 = sphi 0, %s60
    %s64 = sphi 0, %s63
    %s80 = sphi 0, %s64
    %s84 = sphi 0, %s84
    %s86 = sphi 0, %s84
    %s87 = sphi 0, %s86
    %s101 = sphi 0, %s87
    %s105 = sphi 0, %s105
    %s107 = sphi 0, %s105
    %s108 = sphi 0, %s107
    %s122 = sphi 0, %s108
    %s128 = sphi 0, %s130
    %s131 = sphi 0, %s128
    %s132 = sphi 0, %s131
    %s148 = sphi 0, %s132
    %s154 = sphi 0, %s156
    %s157 = sphi 0, %s154
    %s158 = sphi 0, %s157
    %s174 = sphi 0, %s158
  $region4: #{_forward_impl.3} parent=0 // loop_header_branch
    %15 = sbr.rel (%p13) target = $region8
  $region5: #{_forward_impl.3} parent=0 // loop_body
    %s17 = ssub.s32 %s12, 1
    %s18 = ssub.s32 %s12, 2
    %s25 = sadd.s32 1, %s20
    %p26 = scmp.ge.s32.totalorder %s25, 8
    %s27 = scalar_select %p26, 0, %s25
    %s28 = sadd.s32 1, %s19
    %s29 = scalar_select %p26, %s28, %s19
    %p30 = scmp.ge.s32.totalorder %s29, 8
    %s31 = scalar_select %p30, 0, %s29
    %s32 = ssub.s32 %s19, %s31
    %p33 = scmp.eq.s32.totalorder %s32, 0
    %s35 = sadd.s32 %s34, 1
    %s36 = scalar_select %p33, %s34, %s35
    %p39 = pneg %p33
    %p40 = scmp.eq.s32.totalorder %s12, 63
    %p41 = por %p39, %p40
    %p42 = scmp.ne.s32.totalorder %s34, %s37
    %p43 = scmp.eq.s32.totalorder %s12, 0
    %p44 = por %p42, %p43
    %p45 = scmp.ne.s32.totalorder %s34, %s37
    %p46 = scmp.eq.s32.totalorder %s17, 63
    %p47 = por %p45, %p46
    %p48 = scmp.ne.s32.totalorder %s37, %s38
    %p49 = scmp.eq.s32.totalorder %s17, 0
    %p50 = por %p48, %p49
    %p51 = scmp.ne.s32.totalorder %s37, %s38
    %p52 = scmp.eq.s32.totalorder %s18, 63
    %p53 = por %p51, %p52
    %p55 = scmp.ne.s32.totalorder %s38, %s54
    %p56 = scmp.eq.s32.totalorder %s18, 0
    %p57 = por %p55, %p56
    %s58 = ssub.s32 %s19, %s31
    %p59 = scmp.eq.s32.totalorder %s58, 0
    %s61 = sadd.s32 %s60, 1
    %s62 = scalar_select %p59, %s60, %s61
    %p65 = pneg %p59
    %p66 = scmp.eq.s32.totalorder %s12, 63
    %p67 = por %p65, %p66
    %p68 = scmp.ne.s32.totalorder %s60, %s63
    %p69 = scmp.eq.s32.totalorder %s12, 0
    %p70 = por %p68, %p69
    %p71 = scmp.ne.s32.totalorder %s60, %s63
    %p72 = scmp.eq.s32.totalorder %s17, 63
    %p73 = por %p71, %p72
    %p74 = scmp.ne.s32.totalorder %s63, %s64
    %p75 = scmp.eq.s32.totalorder %s17, 0
    %p76 = por %p74, %p75
    %p77 = scmp.ne.s32.totalorder %s63, %s64
    %p78 = scmp.eq.s32.totalorder %s18, 63
    %p79 = por %p77, %p78
    %p81 = scmp.ne.s32.totalorder %s64, %s80
    %p82 = scmp.eq.s32.totalorder %s18, 0
    %p83 = por %p81, %p82
    %s85 = sadd.s32 %s84, 1
    %p88 = scmp.eq.s32.totalorder %s12, 63
    %p89 = scmp.ne.s32.totalorder %s84, %s86
    %p90 = scmp.eq.s32.totalorder %s12, 0
    %p91 = por %p89, %p90
    %p92 = scmp.ne.s32.totalorder %s84, %s86
    %p93 = scmp.eq.s32.totalorder %s17, 63
    %p94 = por %p92, %p93
    %p95 = scmp.ne.s32.totalorder %s86, %s87
    %p96 = scmp.eq.s32.totalorder %s17, 0
    %p97 = por %p95, %p96
    %p98 = scmp.ne.s32.totalorder %s86, %s87
    %p99 = scmp.eq.s32.totalorder %s18, 63
    %p100 = por %p98, %p99
    %p102 = scmp.ne.s32.totalorder %s87, %s101
    %p103 = scmp.eq.s32.totalorder %s18, 0
    %p104 = por %p102, %p103
    %s106 = sadd.s32 %s105, 1
    %p109 = scmp.eq.s32.totalorder %s12, 63
    %p110 = scmp.ne.s32.totalorder %s105, %s107
    %p111 = scmp.eq.s32.totalorder %s12, 0
    %p112 = por %p110, %p111
    %p113 = scmp.ne.s32.totalorder %s105, %s107
    %p114 = scmp.eq.s32.totalorder %s17, 63
    %p115 = por %p113, %p114
    %p116 = scmp.ne.s32.totalorder %s107, %s108
    %p117 = scmp.eq.s32.totalorder %s17, 0
    %p118 = por %p116, %p117
    %p119 = scmp.ne.s32.totalorder %s107, %s108
    %p120 = scmp.eq.s32.totalorder %s18, 63
    %p121 = por %p119, %p120
    %p123 = scmp.ne.s32.totalorder %s108, %s122
    %p124 = scmp.eq.s32.totalorder %s18, 0
    %p125 = por %p123, %p124
    %s126 = ssub.s32 %s19, %s31
    %p127 = scmp.eq.s32.totalorder %s126, 0
    %s129 = sadd.s32 %s128, 1
    %s130 = scalar_select %p127, %s128, %s129
    %p133 = pneg %p127
    %p134 = scmp.eq.s32.totalorder %s12, 63
    %p135 = por %p133, %p134
    %p136 = scmp.ne.s32.totalorder %s128, %s131
    %p137 = scmp.eq.s32.totalorder %s12, 0
    %p138 = por %p136, %p137
    %p139 = scmp.ne.s32.totalorder %s128, %s131
    %p140 = scmp.eq.s32.totalorder %s17, 63
    %p141 = por %p139, %p140
    %p142 = scmp.ne.s32.totalorder %s131, %s132
    %p143 = scmp.eq.s32.totalorder %s17, 0
    %p144 = por %p142, %p143
    %p145 = scmp.ne.s32.totalorder %s131, %s132
    %p146 = scmp.eq.s32.totalorder %s18, 63
    %p147 = por %p145, %p146
    %p149 = scmp.ne.s32.totalorder %s132, %s148
    %p150 = scmp.eq.s32.totalorder %s18, 0
    %p151 = por %p149, %p150
    %s152 = ssub.s32 %s19, %s31
    %p153 = scmp.eq.s32.totalorder %s152, 0
    %s155 = sadd.s32 %s154, 1
    %s156 = scalar_select %p153, %s154, %s155
    %p159 = pneg %p153
    %p160 = scmp.eq.s32.totalorder %s12, 63
    %p161 = por %p159, %p160
    %p162 = scmp.ne.s32.totalorder %s154, %s157
    %p163 = scmp.eq.s32.totalorder %s12, 0
    %p164 = por %p162, %p163
    %p165 = scmp.ne.s32.totalorder %s154, %s157
    %p166 = scmp.eq.s32.totalorder %s17, 63
    %p167 = por %p165, %p166
    %p168 = scmp.ne.s32.totalorder %s157, %s158
    %p169 = scmp.eq.s32.totalorder %s17, 0
    %p170 = por %p168, %p169
    %p171 = scmp.ne.s32.totalorder %s157, %s158
    %p172 = scmp.eq.s32.totalorder %s18, 63
    %p173 = por %p171, %p172
    %p175 = scmp.ne.s32.totalorder %s158, %s174
    %p176 = scmp.eq.s32.totalorder %s18, 0
    %p177 = por %p175, %p176
    %p178 = scmp.le.s32.totalorder 1, %s12
    %p179 = scmp.lt.s32.totalorder %s12, 65
    %p180 = pnand %p178, %p179
    %p181 = pneg %p180
    // Predicated region
    $region9: #{_forward_impl.3} parent=5 // pred_check
      _
    $region10: #{_forward_impl.3} parent=5 // pred_check_branch
      %183 = sbr.rel (%p180) target = $region12
    $region11: #{_forward_impl.3} parent=5 // pred_region
      %s184 = ssub.s32 %s12, 1
      // Predicated region
      $region13: #{_forward_impl.3} parent=11 // pred_check
        %p185 = pneg %p97
      $region14: #{_forward_impl.3} parent=11 // pred_check_branch
        %187 = sbr.rel (%p185) target = $region16
      $region15: #{_forward_impl.3} parent=11 // pred_region
        _
      $region16: #{_forward_impl.3} parent=11 // pred_fallthru
        _
      // Predicated region
      $region17: #{_forward_impl.3} parent=11 // pred_check
        %p188 = pneg %p118
      $region18: #{_forward_impl.3} parent=11 // pred_check_branch
        %190 = sbr.rel (%p188) target = $region20
      $region19: #{_forward_impl.3} parent=11 // pred_region
        _
      $region20: #{_forward_impl.3} parent=11 // pred_fallthru
        _
    $region12: #{_forward_impl.3} parent=5 // pred_fallthru
      _
    %p191 = scmp.lt.s32.totalorder %s12, 64
    // Predicated region
    $region21: #{_forward_impl.3} parent=5 // pred_check
      %p192 = pneg %p191
    $region22: #{_forward_impl.3} parent=5 // pred_check_branch
      %194 = sbr.rel (%p192) target = $region24
    $region23: #{_forward_impl.3} parent=5 // pred_region
      // Predicated region
      $region25: #{_forward_impl.3} parent=23 // pred_check
        %p195 = pneg %p44
      $region26: #{_forward_impl.3} parent=23 // pred_check_branch
        %197 = sbr.rel (%p195) target = $region28
      $region27: #{_forward_impl.3} parent=23 // pred_region
        %s198 = smul.u32 2, %s19
        %p199 = scmp.lt.s32.totalorder %s198, 15
        %s200 = scalar_select %p199, %s198, 15
        %s201 = scalar_lea.vmem %s0, %s200
        %s202 = smul.u32 2, %s19
      $region28: #{_forward_impl.3} parent=23 // pred_fallthru
        _
      // Predicated region
      $region29: #{_forward_impl.3} parent=23 // pred_check
        %p203 = pneg %p70
      $region30: #{_forward_impl.3} parent=23 // pred_check_branch
        %205 = sbr.rel (%p203) target = $region32
      $region31: #{_forward_impl.3} parent=23 // pred_region
        %s206 = smul.u32 2, %s19
        %p207 = scmp.lt.s32.totalorder %s206, 15
        %s208 = scalar_select %p207, %s206, 15
        %s209 = scalar_lea.vmem %s1, %s208
        %s210 = smul.u32 2, %s19
      $region32: #{_forward_impl.3} parent=23 // pred_fallthru
        _
    $region24: #{_forward_impl.3} parent=5 // pred_fallthru
      _
    %p211 = scmp.le.s32.totalorder 1, %s12
    %p212 = scmp.lt.s32.totalorder %s12, 65
    %p213 = pnand %p211, %p212
    %p214 = pneg %p213
    // Predicated region
    $region33: #{_forward_impl.3} parent=5 // pred_check
      _
    $region34: #{_forward_impl.3} parent=5 // pred_check_branch
      %216 = sbr.rel (%p213) target = $region36
    $region35: #{_forward_impl.3} parent=5 // pred_region
      %s217 = ssub.s32 %s12, 1
      %s218 = smul.u32 2, %s21
      %p219 = scmp.lt.s32.totalorder %s218, 15
      %s220 = scalar_select %p219, %s218, 15
      %s221 = scalar_lea.vmem %s0, %s220
      %p222 = pneg %p50
      %p223 = pneg %p47
      %s224 = smul.u32 2, %s21
      %p225 = scmp.lt.s32.totalorder %s224, 15
      %s226 = scalar_select %p225, %s224, 15
      %s227 = scalar_lea.vmem %s1, %s226
      %p228 = pneg %p76
      %p229 = pneg %p73
      %p230 = pneg %p97
      %p231 = pneg %p94
      %p232 = pneg %p118
      %p233 = pneg %p115
      %p234 = pneg %p144
      %p235 = pneg %p141
      %p236 = scmp.lt.s32.totalorder %s21, 7
      %s237 = scalar_select %p236, %s21, 7
      %s238 = smul.addr %s237, 8
      %s239 = scalar_lea.vmem %s4, %s238
      %p240 = pneg %p170
      %p241 = pneg %p167
      %p242 = scmp.lt.s32.totalorder %s21, 7
      %s243 = scalar_select %p242, %s21, 7
      %s244 = smul.addr %s243, 8
      %s245 = scalar_lea.vmem %s5, %s244
      %s246 = smul.u32 2, %s21
      %p247 = scmp.lt.s32.totalorder %s246, 15
      %s248 = scalar_select %p247, %s246, 15
      %s249 = scalar_lea.vmem %s0, %s248
      %s250 = smul.u32 2, %s21
      %s251 = smul.u32 2, %s21
      %p252 = scmp.lt.s32.totalorder %s251, 15
      %s253 = scalar_select %p252, %s251, 15
      %s254 = scalar_lea.vmem %s1, %s253
      %s255 = smul.u32 2, %s21
      %p256 = scmp.lt.s32.totalorder %s21, 7
      %s257 = scalar_select %p256, %s21, 7
      %s258 = smul.addr %s257, 8
      %s259 = scalar_lea.vmem %s4, %s258
      %p260 = scmp.lt.s32.totalorder %s21, 7
      %s261 = scalar_select %p260, %s21, 7
      %s262 = smul.addr %s261, 8
      %s263 = scalar_lea.vmem %s5, %s262
      %p264 = scmp.eq.s32.totalorder %s22, 0
      // Predicated region
      $region37: #{_forward_impl.3} parent=35 // pred_check
        %p265 = pneg %p264
      $region38: #{_forward_impl.3} parent=35 // pred_check_branch
        %267 = sbr.rel (%p265) target = $region40
      $region39: #{_forward_impl.3} parent=35 // pred_region
        %268 = vst [vmem:[#allocation2] sm:$0xff] 0.0
        %269 = vst [vmem:[#allocation2 + $0x8] sm:$0xff] 0.0
      $region40: #{_forward_impl.3} parent=35 // pred_fallthru
        _
      %s270 = smul.u32 %s22, 256
      %s271 = sshra.s32 %s270, 7
      %s272 = sand.u32 %s270, 127
      %s273 = smul.addr %s271, 8
      %s274 = scalar_lea.vmem %s2, %s273
      %v275 = vld [vmem:[%s274] sm:$0xff]
      %v276 = vld [vmem:[%s274 + $0x8] sm:$0xff]
      %v277 = vld [vmem:[%s249] sm:$0x3]
      %v278 = vlaneseq
      %v279 = vshrl.u32 %v278, 7
      %v280 = vadd.s32 %v279, 8
      %v281 = vadd.s32 %v279, 16
      %v282 = vadd.s32 %v279, 24
      %v283 = vadd.s32 %v279, 32
      %v284 = vadd.s32 %v279, 40
      %v285 = vadd.s32 %v279, 48
      %v286 = vadd.s32 %v279, 56
      %v287 = vadd.s32 %v279, 64
      %v288 = vadd.s32 %v279, 72
      %v289 = vadd.s32 %v279, 80
      %v290 = vadd.s32 %v279, 88
      %v291 = vadd.s32 %v279, 96
      %v292 = vadd.s32 %v279, 104
      %v293 = vadd.s32 %v279, 112
      %v294 = vadd.s32 %v279, 120
      %v295 = vadd.s32 %v279, 128
      %v296 = vadd.s32 %v279, 136
      %v297 = vadd.s32 %v279, 144
      %v298 = vadd.s32 %v279, 152
      %v299 = vadd.s32 %v279, 160
      %v300 = vadd.s32 %v279, 168
      %v301 = vadd.s32 %v279, 176
      %v302 = vadd.s32 %v279, 184
      %v303 = vadd.s32 %v279, 192
      %v304 = vadd.s32 %v279, 200
      %v305 = vadd.s32 %v279, 208
      %v306 = vadd.s32 %v279, 216
      %v307 = vadd.s32 %v279, 224
      %v308 = vadd.s32 %v279, 232
      %v309 = vadd.s32 %v279, 240
      %v310 = vadd.s32 %v279, 248
      %v311 = vstv %s270
      %v312 = vsub.s32 %v277, %v311
      %v313 = vperm.slane %v312, 0
      %v314 = vperm.slane %v312, 1
      %vm315 = vcmp.eq.s32.totalorder %v279, %v313
      %vm316 = vcmp.eq.s32.totalorder %v279, %v314
      %vm317 = vcmp.eq.s32.totalorder %v280, %v313
      %vm318 = vcmp.eq.s32.totalorder %v280, %v314
      %vm319 = vcmp.eq.s32.totalorder %v281, %v313
      %vm320 = vcmp.eq.s32.totalorder %v281, %v314
      %vm321 = vcmp.eq.s32.totalorder %v282, %v313
      %vm322 = vcmp.eq.s32.totalorder %v282, %v314
      %vm323 = vcmp.eq.s32.totalorder %v283, %v313
      %vm324 = vcmp.eq.s32.totalorder %v283, %v314
      %vm325 = vcmp.eq.s32.totalorder %v284, %v313
      %vm326 = vcmp.eq.s32.totalorder %v284, %v314
      %vm327 = vcmp.eq.s32.totalorder %v285, %v313
      %vm328 = vcmp.eq.s32.totalorder %v285, %v314
      %vm329 = vcmp.eq.s32.totalorder %v286, %v313
      %vm330 = vcmp.eq.s32.totalorder %v286, %v314
      %vm331 = vcmp.eq.s32.totalorder %v287, %v313
      %vm332 = vcmp.eq.s32.totalorder %v287, %v314
      %vm333 = vcmp.eq.s32.totalorder %v288, %v313
      %vm334 = vcmp.eq.s32.totalorder %v288, %v314
      %vm335 = vcmp.eq.s32.totalorder %v289, %v313
      %vm336 = vcmp.eq.s32.totalorder %v289, %v314
      %vm337 = vcmp.eq.s32.totalorder %v290, %v313
      %vm338 = vcmp.eq.s32.totalorder %v290, %v314
      %vm339 = vcmp.eq.s32.totalorder %v291, %v313
      %vm340 = vcmp.eq.s32.totalorder %v291, %v314
      %vm341 = vcmp.eq.s32.totalorder %v292, %v313
      %vm342 = vcmp.eq.s32.totalorder %v292, %v314
      %vm343 = vcmp.eq.s32.totalorder %v293, %v313
      %vm344 = vcmp.eq.s32.totalorder %v293, %v314
      %vm345 = vcmp.eq.s32.totalorder %v294, %v313
      %vm346 = vcmp.eq.s32.totalorder %v294, %v314
      %vm347 = vcmp.eq.s32.totalorder %v295, %v313
      %vm348 = vcmp.eq.s32.totalorder %v295, %v314
      %vm349 = vcmp.eq.s32.totalorder %v296, %v313
      %vm350 = vcmp.eq.s32.totalorder %v296, %v314
      %vm351 = vcmp.eq.s32.totalorder %v297, %v313
      %vm352 = vcmp.eq.s32.totalorder %v297, %v314
      %vm353 = vcmp.eq.s32.totalorder %v298, %v313
      %vm354 = vcmp.eq.s32.totalorder %v298, %v314
      %vm355 = vcmp.eq.s32.totalorder %v299, %v313
      %vm356 = vcmp.eq.s32.totalorder %v299, %v314
      %vm357 = vcmp.eq.s32.totalorder %v300, %v313
      %vm358 = vcmp.eq.s32.totalorder %v300, %v314
      %vm359 = vcmp.eq.s32.totalorder %v301, %v313
      %vm360 = vcmp.eq.s32.totalorder %v301, %v314
      %vm361 = vcmp.eq.s32.totalorder %v302, %v313
      %vm362 = vcmp.eq.s32.totalorder %v302, %v314
      %vm363 = vcmp.eq.s32.totalorder %v303, %v313
      %vm364 = vcmp.eq.s32.totalorder %v303, %v314
      %vm365 = vcmp.eq.s32.totalorder %v304, %v313
      %vm366 = vcmp.eq.s32.totalorder %v304, %v314
      %vm367 = vcmp.eq.s32.totalorder %v305, %v313
      %vm368 = vcmp.eq.s32.totalorder %v305, %v314
      %vm369 = vcmp.eq.s32.totalorder %v306, %v313
      %vm370 = vcmp.eq.s32.totalorder %v306, %v314
      %vm371 = vcmp.eq.s32.totalorder %v307, %v313
      %vm372 = vcmp.eq.s32.totalorder %v307, %v314
      %vm373 = vcmp.eq.s32.totalorder %v308, %v313
      %vm374 = vcmp.eq.s32.totalorder %v308, %v314
      %vm375 = vcmp.eq.s32.totalorder %v309, %v313
      %vm376 = vcmp.eq.s32.totalorder %v309, %v314
      %vm377 = vcmp.eq.s32.totalorder %v310, %v313
      %vm378 = vcmp.eq.s32.totalorder %v310, %v314
      %v379 = vsel %vm315, 1, 0
      %v380 = vsel %vm316, 1, 0
      %v381 = vsel %vm317, 1, 0
      %v382 = vsel %vm318, 1, 0
      %v383 = vsel %vm319, 1, 0
      %v384 = vsel %vm320, 1, 0
      %v385 = vsel %vm321, 1, 0
      %v386 = vsel %vm322, 1, 0
      %v387 = vsel %vm323, 1, 0
      %v388 = vsel %vm324, 1, 0
      %v389 = vsel %vm325, 1, 0
      %v390 = vsel %vm326, 1, 0
      %v391 = vsel %vm327, 1, 0
      %v392 = vsel %vm328, 1, 0
      %v393 = vsel %vm329, 1, 0
      %v394 = vsel %vm330, 1, 0
      %v395 = vsel %vm331, 1, 0
      %v396 = vsel %vm332, 1, 0
      %v397 = vsel %vm333, 1, 0
      %v398 = vsel %vm334, 1, 0
      %v399 = vsel %vm335, 1, 0
      %v400 = vsel %vm336, 1, 0
      %v401 = vsel %vm337, 1, 0
      %v402 = vsel %vm338, 1, 0
      %v403 = vsel %vm339, 1, 0
      %v404 = vsel %vm340, 1, 0
      %v405 = vsel %vm341, 1, 0
      %v406 = vsel %vm342, 1, 0
      %v407 = vsel %vm343, 1, 0
      %v408 = vsel %vm344, 1, 0
      %v409 = vsel %vm345, 1, 0
      %v410 = vsel %vm346, 1, 0
      %v411 = vsel %vm347, 1, 0
      %v412 = vsel %vm348, 1, 0
      %v413 = vsel %vm349, 1, 0
      %v414 = vsel %vm350, 1, 0
      %v415 = vsel %vm351, 1, 0
      %v416 = vsel %vm352, 1, 0
      %v417 = vsel %vm353, 1, 0
      %v418 = vsel %vm354, 1, 0
      %v419 = vsel %vm355, 1, 0
      %v420 = vsel %vm356, 1, 0
      %v421 = vsel %vm357, 1, 0
      %v422 = vsel %vm358, 1, 0
      %v423 = vsel %vm359, 1, 0
      %v424 = vsel %vm360, 1, 0
      %v425 = vsel %vm361, 1, 0
      %v426 = vsel %vm362, 1, 0
      %v427 = vsel %vm363, 1, 0
      %v428 = vsel %vm364, 1, 0
      %v429 = vsel %vm365, 1, 0
      %v430 = vsel %vm366, 1, 0
      %v431 = vsel %vm367, 1, 0
      %v432 = vsel %vm368, 1, 0
      %v433 = vsel %vm369, 1, 0
      %v434 = vsel %vm370, 1, 0
      %v435 = vsel %vm371, 1, 0
      %v436 = vsel %vm372, 1, 0
      %v437 = vsel %vm373, 1, 0
      %v438 = vsel %vm374, 1, 0
      %v439 = vsel %vm375, 1, 0
      %v440 = vsel %vm376, 1, 0
      %v441 = vsel %vm377, 1, 0
      %v442 = vsel %vm378, 1, 0
      %v443 = vcvt.s32.f32 %v379
      %v444 = vcvt.s32.f32 %v380
      %v445 = vcvt.s32.f32 %v381
      %v446 = vcvt.s32.f32 %v382
      %v447 = vcvt.s32.f32 %v383
      %v448 = vcvt.s32.f32 %v384
      %v449 = vcvt.s32.f32 %v385
      %v450 = vcvt.s32.f32 %v386
      %v451 = vcvt.s32.f32 %v387
      %v452 = vcvt.s32.f32 %v388
      %v453 = vcvt.s32.f32 %v389
      %v454 = vcvt.s32.f32 %v390
      %v455 = vcvt.s32.f32 %v391
      %v456 = vcvt.s32.f32 %v392
      %v457 = vcvt.s32.f32 %v393
      %v458 = vcvt.s32.f32 %v394
      %v459 = vcvt.s32.f32 %v395
      %v460 = vcvt.s32.f32 %v396
      %v461 = vcvt.s32.f32 %v397
      %v462 = vcvt.s32.f32 %v398
      %v463 = vcvt.s32.f32 %v399
      %v464 = vcvt.s32.f32 %v400
      %v465 = vcvt.s32.f32 %v401
      %v466 = vcvt.s32.f32 %v402
      %v467 = vcvt.s32.f32 %v403
      %v468 = vcvt.s32.f32 %v404
      %v469 = vcvt.s32.f32 %v405
      %v470 = vcvt.s32.f32 %v406
      %v471 = vcvt.s32.f32 %v407
      %v472 = vcvt.s32.f32 %v408
      %v473 = vcvt.s32.f32 %v409
      %v474 = vcvt.s32.f32 %v410
      %v475 = vcvt.s32.f32 %v411
      %v476 = vcvt.s32.f32 %v412
      %v477 = vcvt.s32.f32 %v413
      %v478 = vcvt.s32.f32 %v414
      %v479 = vcvt.s32.f32 %v415
      %v480 = vcvt.s32.f32 %v416
      %v481 = vcvt.s32.f32 %v417
      %v482 = vcvt.s32.f32 %v418
      %v483 = vcvt.s32.f32 %v419
      %v484 = vcvt.s32.f32 %v420
      %v485 = vcvt.s32.f32 %v421
      %v486 = vcvt.s32.f32 %v422
      %v487 = vcvt.s32.f32 %v423
      %v488 = vcvt.s32.f32 %v424
      %v489 = vcvt.s32.f32 %v425
      %v490 = vcvt.s32.f32 %v426
      %v491 = vcvt.s32.f32 %v427
      %v492 = vcvt.s32.f32 %v428
      %v493 = vcvt.s32.f32 %v429
      %v494 = vcvt.s32.f32 %v430
      %v495 = vcvt.s32.f32 %v431
      %v496 = vcvt.s32.f32 %v432
      %v497 = vcvt.s32.f32 %v433
      %v498 = vcvt.s32.f32 %v434
      %v499 = vcvt.s32.f32 %v435
      %v500 = vcvt.s32.f32 %v436
      %v501 = vcvt.s32.f32 %v437
      %v502 = vcvt.s32.f32 %v438
      %v503 = vcvt.s32.f32 %v439
      %v504 = vcvt.s32.f32 %v440
      %v505 = vcvt.s32.f32 %v441
      %v506 = vcvt.s32.f32 %v442
      %v507 = vld [vmem:[#allocation2] sm:$0xff]
      %v508 = vld [vmem:[#allocation2 + $0x8] sm:$0xff]
      %509 = vmatpush.msra.mxu0 %v473
      %510 = vmatpush.msra.mxu0 %v471
      %511 = vmatpush.msra.mxu0 %v469
      %512 = vmatpush.msra.mxu0 %v467
      %513 = vmatpush.msra.mxu0 %v465
      %514 = vmatpush.msra.mxu0 %v463
      %515 = vmatpush.msra.mxu0 %v461
      %516 = vmatpush.msra.mxu0 %v459
      %517 = vmatpush.msra.mxu0 %v457
      %518 = vmatpush.msra.mxu0 %v455
      %519 = vmatpush.msra.mxu0 %v453
      %520 = vmatpush.msra.mxu0 %v451
      %521 = vmatpush.msra.mxu0 %v449
      %522 = vmatpush.msra.mxu0 %v447
      %523 = vmatpush.msra.mxu0 %v445
      %524 = vmatpush.msra.mxu0 %v443
      %525 = vmatmul.f32.gmra.mxu0 %v275
      %v526 = vpop.f32.mrf.mxu0
      %v527 = vadd.f32 0.0, %v526
      %528 = vdwg.mxu0
      %529 = vmatpush.msra.mxu0 %v505
      %530 = vmatpush.msra.mxu0 %v503
      %531 = vmatpush.msra.mxu0 %v501
      %532 = vmatpush.msra.mxu0 %v499
      %533 = vmatpush.msra.mxu0 %v497
      %534 = vmatpush.msra.mxu0 %v495
      %535 = vmatpush.msra.mxu0 %v493
      %536 = vmatpush.msra.mxu0 %v491
      %537 = vmatpush.msra.mxu0 %v489
      %538 = vmatpush.msra.mxu0 %v487
      %539 = vmatpush.msra.mxu0 %v485
      %540 = vmatpush.msra.mxu0 %v483
      %541 = vmatpush.msra.mxu0 %v481
      %542 = vmatpush.msra.mxu0 %v479
      %543 = vmatpush.msra.mxu0 %v477
      %544 = vmatpush.msra.mxu0 %v475
      %545 = vmatmul.f32.gmra.mxu0 %v276
      %v546 = vpop.f32.mrf.mxu0
      %v547 = vadd.f32 %v527, %v546
      %548 = vdwg.mxu0
      %549 = vmatpush.msra.mxu0 %v474
      %550 = vmatpush.msra.mxu0 %v472
      %551 = vmatpush.msra.mxu0 %v470
      %552 = vmatpush.msra.mxu0 %v468
      %553 = vmatpush.msra.mxu0 %v466
      %554 = vmatpush.msra.mxu0 %v464
      %555 = vmatpush.msra.mxu0 %v462
      %556 = vmatpush.msra.mxu0 %v460
      %557 = vmatpush.msra.mxu0 %v458
      %558 = vmatpush.msra.mxu0 %v456
      %559 = vmatpush.msra.mxu0 %v454
      %560 = vmatpush.msra.mxu0 %v452
      %561 = vmatpush.msra.mxu0 %v450
      %562 = vmatpush.msra.mxu0 %v448
      %563 = vmatpush.msra.mxu0 %v446
      %564 = vmatpush.msra.mxu0 %v444
      %565 = vmatmul.f32.gmra.mxu0 %v275
      %v566 = vpop.f32.mrf.mxu0
      %v567 = vadd.f32 0.0, %v566
      %568 = vdwg.mxu0
      %569 = vmatpush.msra.mxu0 %v506
      %570 = vmatpush.msra.mxu0 %v504
      %571 = vmatpush.msra.mxu0 %v502
      %572 = vmatpush.msra.mxu0 %v500
      %573 = vmatpush.msra.mxu0 %v498
      %574 = vmatpush.msra.mxu0 %v496
      %575 = vmatpush.msra.mxu0 %v494
      %576 = vmatpush.msra.mxu0 %v492
      %577 = vmatpush.msra.mxu0 %v490
      %578 = vmatpush.msra.mxu0 %v488
      %579 = vmatpush.msra.mxu0 %v486
      %580 = vmatpush.msra.mxu0 %v484
      %581 = vmatpush.msra.mxu0 %v482
      %582 = vmatpush.msra.mxu0 %v480
      %583 = vmatpush.msra.mxu0 %v478
      %584 = vmatpush.msra.mxu0 %v476
      %585 = vmatmul.f32.gmra.mxu0 %v276
      %v586 = vpop.f32.mrf.mxu0
      %v587 = vadd.f32 %v567, %v586
      %588 = vdwg.mxu0
      %v589 = vadd.f32 %v507, %v547
      %v590 = vadd.f32 %v508, %v587
      %591 = vst [vmem:[#allocation2] sm:$0xff] %v589
      %592 = vst [vmem:[#allocation2 + $0x8] sm:$0xff] %v590
      %p593 = scmp.eq.s32.totalorder %s22, 7
      // Predicated region
      $region41: #{_forward_impl.3} parent=35 // pred_check
        %p594 = pneg %p593
      $region42: #{_forward_impl.3} parent=35 // pred_check_branch
        %596 = sbr.rel (%p594) target = $region44
      $region43: #{_forward_impl.3} parent=35 // pred_region
        %v597 = vld [vmem:[#allocation2] sm:$0xff]
        %v598 = vld [vmem:[#allocation2 + $0x8] sm:$0xff]
        %v599 = vsub.f32 0.0, %v597
        %v600 = vmul.f32 %v599, %v598
        %601 = vst [vmem:[%s259] sm:$0xff] %v600
        %v602 = vld [vmem:[%s254] sm:$0x3]
        %v603 = vld [vmem:[%s3] sm:$0xff]
        %v604 = vstv 0
        %v605 = vsub.s32 %v602, %v604
        %v606 = vperm.slane %v605, 0
        %v607 = vperm.slane %v605, 1
        %vm608 = vcmp.eq.s32.totalorder %v279, %v606
        %vm609 = vcmp.eq.s32.totalorder %v279, %v607
        %vm610 = vcmp.eq.s32.totalorder %v280, %v606
        %vm611 = vcmp.eq.s32.totalorder %v280, %v607
        %vm612 = vcmp.eq.s32.totalorder %v281, %v606
        %vm613 = vcmp.eq.s32.totalorder %v281, %v607
        %vm614 = vcmp.eq.s32.totalorder %v282, %v606
        %vm615 = vcmp.eq.s32.totalorder %v282, %v607
        %vm616 = vcmp.eq.s32.totalorder %v283, %v606
        %vm617 = vcmp.eq.s32.totalorder %v283, %v607
        %vm618 = vcmp.eq.s32.totalorder %v284, %v606
        %vm619 = vcmp.eq.s32.totalorder %v284, %v607
        %vm620 = vcmp.eq.s32.totalorder %v285, %v606
        %vm621 = vcmp.eq.s32.totalorder %v285, %v607
        %vm622 = vcmp.eq.s32.totalorder %v286, %v606
        %vm623 = vcmp.eq.s32.totalorder %v286, %v607
        %vm624 = vcmp.eq.s32.totalorder %v287, %v606
        %vm625 = vcmp.eq.s32.totalorder %v287, %v607
        %vm626 = vcmp.eq.s32.totalorder %v288, %v606
        %vm627 = vcmp.eq.s32.totalorder %v288, %v607
        %vm628 = vcmp.eq.s32.totalorder %v289, %v606
        %vm629 = vcmp.eq.s32.totalorder %v289, %v607
        %vm630 = vcmp.eq.s32.totalorder %v290, %v606
        %vm631 = vcmp.eq.s32.totalorder %v290, %v607
        %vm632 = vcmp.eq.s32.totalorder %v291, %v606
        %vm633 = vcmp.eq.s32.totalorder %v291, %v607
        %vm634 = vcmp.eq.s32.totalorder %v292, %v606
        %vm635 = vcmp.eq.s32.totalorder %v292, %v607
        %vm636 = vcmp.eq.s32.totalorder %v293, %v606
        %vm637 = vcmp.eq.s32.totalorder %v293, %v607
        %vm638 = vcmp.eq.s32.totalorder %v294, %v606
        %vm639 = vcmp.eq.s32.totalorder %v294, %v607
        %v640 = vsel %vm608, 1, 0
        %v641 = vsel %vm609, 1, 0
        %v642 = vsel %vm610, 1, 0
        %v643 = vsel %vm611, 1, 0
        %v644 = vsel %vm612, 1, 0
        %v645 = vsel %vm613, 1, 0
        %v646 = vsel %vm614, 1, 0
        %v647 = vsel %vm615, 1, 0
        %v648 = vsel %vm616, 1, 0
        %v649 = vsel %vm617, 1, 0
        %v650 = vsel %vm618, 1, 0
        %v651 = vsel %vm619, 1, 0
        %v652 = vsel %vm620, 1, 0
        %v653 = vsel %vm621, 1, 0
        %v654 = vsel %vm622, 1, 0
        %v655 = vsel %vm623, 1, 0
        %v656 = vsel %vm624, 1, 0
        %v657 = vsel %vm625, 1, 0
        %v658 = vsel %vm626, 1, 0
        %v659 = vsel %vm627, 1, 0
        %v660 = vsel %vm628, 1, 0
        %v661 = vsel %vm629, 1, 0
        %v662 = vsel %vm630, 1, 0
        %v663 = vsel %vm631, 1, 0
        %v664 = vsel %vm632, 1, 0
        %v665 = vsel %vm633, 1, 0
        %v666 = vsel %vm634, 1, 0
        %v667 = vsel %vm635, 1, 0
        %v668 = vsel %vm636, 1, 0
        %v669 = vsel %vm637, 1, 0
        %v670 = vsel %vm638, 1, 0
        %v671 = vsel %vm639, 1, 0
        %v672 = vcvt.s32.f32 %v640
        %v673 = vcvt.s32.f32 %v641
        %v674 = vcvt.s32.f32 %v642
        %v675 = vcvt.s32.f32 %v643
        %v676 = vcvt.s32.f32 %v644
        %v677 = vcvt.s32.f32 %v645
        %v678 = vcvt.s32.f32 %v646
        %v679 = vcvt.s32.f32 %v647
        %v680 = vcvt.s32.f32 %v648
        %v681 = vcvt.s32.f32 %v649
        %v682 = vcvt.s32.f32 %v650
        %v683 = vcvt.s32.f32 %v651
        %v684 = vcvt.s32.f32 %v652
        %v685 = vcvt.s32.f32 %v653
        %v686 = vcvt.s32.f32 %v654
        %v687 = vcvt.s32.f32 %v655
        %v688 = vcvt.s32.f32 %v656
        %v689 = vcvt.s32.f32 %v657
        %v690 = vcvt.s32.f32 %v658
        %v691 = vcvt.s32.f32 %v659
        %v692 = vcvt.s32.f32 %v660
        %v693 = vcvt.s32.f32 %v661
        %v694 = vcvt.s32.f32 %v662
        %v695 = vcvt.s32.f32 %v663
        %v696 = vcvt.s32.f32 %v664
        %v697 = vcvt.s32.f32 %v665
        %v698 = vcvt.s32.f32 %v666
        %v699 = vcvt.s32.f32 %v667
        %v700 = vcvt.s32.f32 %v668
        %v701 = vcvt.s32.f32 %v669
        %v702 = vcvt.s32.f32 %v670
        %v703 = vcvt.s32.f32 %v671
        %s704 = scalar_lea.vmem %s3, 8
        %v705 = vld [vmem:[%s704] sm:$0xff]
        %v706 = vstv 128
        %v707 = vsub.s32 %v602, %v706
        %v708 = vperm.slane %v707, 0
        %v709 = vperm.slane %v707, 1
        %vm710 = vcmp.eq.s32.totalorder %v279, %v708
        %vm711 = vcmp.eq.s32.totalorder %v279, %v709
        %vm712 = vcmp.eq.s32.totalorder %v280, %v708
        %vm713 = vcmp.eq.s32.totalorder %v280, %v709
        %vm714 = vcmp.eq.s32.totalorder %v281, %v708
        %vm715 = vcmp.eq.s32.totalorder %v281, %v709
        %vm716 = vcmp.eq.s32.totalorder %v282, %v708
        %vm717 = vcmp.eq.s32.totalorder %v282, %v709
        %vm718 = vcmp.eq.s32.totalorder %v283, %v708
        %vm719 = vcmp.eq.s32.totalorder %v283, %v709
        %vm720 = vcmp.eq.s32.totalorder %v284, %v708
        %vm721 = vcmp.eq.s32.totalorder %v284, %v709
        %vm722 = vcmp.eq.s32.totalorder %v285, %v708
        %vm723 = vcmp.eq.s32.totalorder %v285, %v709
        %vm724 = vcmp.eq.s32.totalorder %v286, %v708
        %vm725 = vcmp.eq.s32.totalorder %v286, %v709
        %vm726 = vcmp.eq.s32.totalorder %v287, %v708
        %vm727 = vcmp.eq.s32.totalorder %v287, %v709
        %vm728 = vcmp.eq.s32.totalorder %v288, %v708
        %vm729 = vcmp.eq.s32.totalorder %v288, %v709
        %vm730 = vcmp.eq.s32.totalorder %v289, %v708
        %vm731 = vcmp.eq.s32.totalorder %v289, %v709
        %vm732 = vcmp.eq.s32.totalorder %v290, %v708
        %vm733 = vcmp.eq.s32.totalorder %v290, %v709
        %vm734 = vcmp.eq.s32.totalorder %v291, %v708
        %vm735 = vcmp.eq.s32.totalorder %v291, %v709
        %vm736 = vcmp.eq.s32.totalorder %v292, %v708
        %vm737 = vcmp.eq.s32.totalorder %v292, %v709
        %vm738 = vcmp.eq.s32.totalorder %v293, %v708
        %vm739 = vcmp.eq.s32.totalorder %v293, %v709
        %vm740 = vcmp.eq.s32.totalorder %v294, %v708
        %vm741 = vcmp.eq.s32.totalorder %v294, %v709
        %v742 = vsel %vm710, 1, 0
        %v743 = vsel %vm711, 1, 0
        %v744 = vsel %vm712, 1, 0
        %v745 = vsel %vm713, 1, 0
        %v746 = vsel %vm714, 1, 0
        %v747 = vsel %vm715, 1, 0
        %v748 = vsel %vm716, 1, 0
        %v749 = vsel %vm717, 1, 0
        %v750 = vsel %vm718, 1, 0
        %v751 = vsel %vm719, 1, 0
        %v752 = vsel %vm720, 1, 0
        %v753 = vsel %vm721, 1, 0
        %v754 = vsel %vm722, 1, 0
        %v755 = vsel %vm723, 1, 0
        %v756 = vsel %vm724, 1, 0
        %v757 = vsel %vm725, 1, 0
        %v758 = vsel %vm726, 1, 0
        %v759 = vsel %vm727, 1, 0
        %v760 = vsel %vm728, 1, 0
        %v761 = vsel %vm729, 1, 0
        %v762 = vsel %vm730, 1, 0
        %v763 = vsel %vm731, 1, 0
        %v764 = vsel %vm732, 1, 0
        %v765 = vsel %vm733, 1, 0
        %v766 = vsel %vm734, 1, 0
        %v767 = vsel %vm735, 1, 0
        %v768 = vsel %vm736, 1, 0
        %v769 = vsel %vm737, 1, 0
        %v770 = vsel %vm738, 1, 0
        %v771 = vsel %vm739, 1, 0
        %v772 = vsel %vm740, 1, 0
        %v773 = vsel %vm741, 1, 0
        %v774 = vcvt.s32.f32 %v742
        %v775 = vcvt.s32.f32 %v743
        %v776 = vcvt.s32.f32 %v744
        %v777 = vcvt.s32.f32 %v745
        %v778 = vcvt.s32.f32 %v746
        %v779 = vcvt.s32.f32 %v747
        %v780 = vcvt.s32.f32 %v748
        %v781 = vcvt.s32.f32 %v749
        %v782 = vcvt.s32.f32 %v750
        %v783 = vcvt.s32.f32 %v751
        %v784 = vcvt.s32.f32 %v752
        %v785 = vcvt.s32.f32 %v753
        %v786 = vcvt.s32.f32 %v754
        %v787 = vcvt.s32.f32 %v755
        %v788 = vcvt.s32.f32 %v756
        %v789 = vcvt.s32.f32 %v757
        %v790 = vcvt.s32.f32 %v758
        %v791 = vcvt.s32.f32 %v759
        %v792 = vcvt.s32.f32 %v760
        %v793 = vcvt.s32.f32 %v761
        %v794 = vcvt.s32.f32 %v762
        %v795 = vcvt.s32.f32 %v763
        %v796 = vcvt.s32.f32 %v764
        %v797 = vcvt.s32.f32 %v765
        %v798 = vcvt.s32.f32 %v766
        %v799 = vcvt.s32.f32 %v767
        %v800 = vcvt.s32.f32 %v768
        %v801 = vcvt.s32.f32 %v769
        %v802 = vcvt.s32.f32 %v770
        %v803 = vcvt.s32.f32 %v771
        %v804 = vcvt.s32.f32 %v772
        %v805 = vcvt.s32.f32 %v773
        %806 = vmatpush.msra.mxu0 %v804
        %807 = vmatpush.msra.mxu0 %v802
        %808 = vmatpush.msra.mxu0 %v800
        %809 = vmatpush.msra.mxu0 %v798
        %810 = vmatpush.msra.mxu0 %v796
        %811 = vmatpush.msra.mxu0 %v794
        %812 = vmatpush.msra.mxu0 %v792
        %813 = vmatpush.msra.mxu0 %v790
        %814 = vmatpush.msra.mxu0 %v788
        %815 = vmatpush.msra.mxu0 %v786
        %816 = vmatpush.msra.mxu0 %v784
        %817 = vmatpush.msra.mxu0 %v782
        %818 = vmatpush.msra.mxu0 %v780
        %819 = vmatpush.msra.mxu0 %v778
        %820 = vmatpush.msra.mxu0 %v776
        %821 = vmatpush.msra.mxu0 %v774
        %822 = vmatmul.f32.gmra.mxu0 %v705
        %v823 = vpop.f32.mrf.mxu0
        %v824 = vadd.f32 0.0, %v823
        %825 = vdwg.mxu0
        %826 = vmatpush.msra.mxu0 %v805
        %827 = vmatpush.msra.mxu0 %v803
        %828 = vmatpush.msra.mxu0 %v801
        %829 = vmatpush.msra.mxu0 %v799
        %830 = vmatpush.msra.mxu0 %v797
        %831 = vmatpush.msra.mxu0 %v795
        %832 = vmatpush.msra.mxu0 %v793
        %833 = vmatpush.msra.mxu0 %v791
        %834 = vmatpush.msra.mxu0 %v789
        %835 = vmatpush.msra.mxu0 %v787
        %836 = vmatpush.msra.mxu0 %v785
        %837 = vmatpush.msra.mxu0 %v783
        %838 = vmatpush.msra.mxu0 %v781
        %839 = vmatpush.msra.mxu0 %v779
        %840 = vmatpush.msra.mxu0 %v777
        %841 = vmatpush.msra.mxu0 %v775
        %842 = vmatmul.f32.gmra.mxu0 %v705
        %v843 = vpop.f32.mrf.mxu0
        %v844 = vadd.f32 0.0, %v843
        %845 = vdwg.mxu0
        %846 = vmatpush.msra.mxu0 %v702
        %847 = vmatpush.msra.mxu0 %v700
        %848 = vmatpush.msra.mxu0 %v698
        %849 = vmatpush.msra.mxu0 %v696
        %850 = vmatpush.msra.mxu0 %v694
        %851 = vmatpush.msra.mxu0 %v692
        %852 = vmatpush.msra.mxu0 %v690
        %853 = vmatpush.msra.mxu0 %v688
        %854 = vmatpush.msra.mxu0 %v686
        %855 = vmatpush.msra.mxu0 %v684
        %856 = vmatpush.msra.mxu0 %v682
        %857 = vmatpush.msra.mxu0 %v680
        %858 = vmatpush.msra.mxu0 %v678
        %859 = vmatpush.msra.mxu0 %v676
        %860 = vmatpush.msra.mxu0 %v674
        %861 = vmatpush.msra.mxu0 %v672
        %862 = vmatmul.f32.gmra.mxu0 %v603
        %v863 = vpop.f32.mrf.mxu0
        %v864 = vadd.f32 %v824, %v863
        %865 = vdwg.mxu0
        %866 = vmatpush.msra.mxu0 %v703
        %867 = vmatpush.msra.mxu0 %v701
        %868 = vmatpush.msra.mxu0 %v699
        %869 = vmatpush.msra.mxu0 %v697
        %870 = vmatpush.msra.mxu0 %v695
        %871 = vmatpush.msra.mxu0 %v693
        %872 = vmatpush.msra.mxu0 %v691
        %873 = vmatpush.msra.mxu0 %v689
        %874 = vmatpush.msra.mxu0 %v687
        %875 = vmatpush.msra.mxu0 %v685
        %876 = vmatpush.msra.mxu0 %v683
        %877 = vmatpush.msra.mxu0 %v681
        %878 = vmatpush.msra.mxu0 %v679
        %879 = vmatpush.msra.mxu0 %v677
        %880 = vmatpush.msra.mxu0 %v675
        %881 = vmatpush.msra.mxu0 %v673
        %882 = vmatmul.f32.gmra.mxu0 %v603
        %v883 = vpop.f32.mrf.mxu0
        %v884 = vadd.f32 %v844, %v883
        %885 = vdwg.mxu0
        %s886 = scalar_lea.vmem %s3, 16
        %v887 = vld [vmem:[%s886] sm:$0xff]
        %v888 = vstv 256
        %v889 = vsub.s32 %v602, %v888
        %v890 = vperm.slane %v889, 0
        %v891 = vperm.slane %v889, 1
        %vm892 = vcmp.eq.s32.totalorder %v279, %v890
        %vm893 = vcmp.eq.s32.totalorder %v279, %v891
        %vm894 = vcmp.eq.s32.totalorder %v280, %v890
        %vm895 = vcmp.eq.s32.totalorder %v280, %v891
        %vm896 = vcmp.eq.s32.totalorder %v281, %v890
        %vm897 = vcmp.eq.s32.totalorder %v281, %v891
        %vm898 = vcmp.eq.s32.totalorder %v282, %v890
        %vm899 = vcmp.eq.s32.totalorder %v282, %v891
        %vm900 = vcmp.eq.s32.totalorder %v283, %v890
        %vm901 = vcmp.eq.s32.totalorder %v283, %v891
        %vm902 = vcmp.eq.s32.totalorder %v284, %v890
        %vm903 = vcmp.eq.s32.totalorder %v284, %v891
        %vm904 = vcmp.eq.s32.totalorder %v285, %v890
        %vm905 = vcmp.eq.s32.totalorder %v285, %v891
        %vm906 = vcmp.eq.s32.totalorder %v286, %v890
        %vm907 = vcmp.eq.s32.totalorder %v286, %v891
        %vm908 = vcmp.eq.s32.totalorder %v287, %v890
        %vm909 = vcmp.eq.s32.totalorder %v287, %v891
        %vm910 = vcmp.eq.s32.totalorder %v288, %v890
        %vm911 = vcmp.eq.s32.totalorder %v288, %v891
        %vm912 = vcmp.eq.s32.totalorder %v289, %v890
        %vm913 = vcmp.eq.s32.totalorder %v289, %v891
        %vm914 = vcmp.eq.s32.totalorder %v290, %v890
        %vm915 = vcmp.eq.s32.totalorder %v290, %v891
        %vm916 = vcmp.eq.s32.totalorder %v291, %v890
        %vm917 = vcmp.eq.s32.totalorder %v291, %v891
        %vm918 = vcmp.eq.s32.totalorder %v292, %v890
        %vm919 = vcmp.eq.s32.totalorder %v292, %v891
        %vm920 = vcmp.eq.s32.totalorder %v293, %v890
        %vm921 = vcmp.eq.s32.totalorder %v293, %v891
        %vm922 = vcmp.eq.s32.totalorder %v294, %v890
        %vm923 = vcmp.eq.s32.totalorder %v294, %v891
        %v924 = vsel %vm892, 1, 0
        %v925 = vsel %vm893, 1, 0
        %v926 = vsel %vm894, 1, 0
        %v927 = vsel %vm895, 1, 0
        %v928 = vsel %vm896, 1, 0
        %v929 = vsel %vm897, 1, 0
        %v930 = vsel %vm898, 1, 0
        %v931 = vsel %vm899, 1, 0
        %v932 = vsel %vm900, 1, 0
        %v933 = vsel %vm901, 1, 0
        %v934 = vsel %vm902, 1, 0
        %v935 = vsel %vm903, 1, 0
        %v936 = vsel %vm904, 1, 0
        %v937 = vsel %vm905, 1, 0
        %v938 = vsel %vm906, 1, 0
        %v939 = vsel %vm907, 1, 0
        %v940 = vsel %vm908, 1, 0
        %v941 = vsel %vm909, 1, 0
        %v942 = vsel %vm910, 1, 0
        %v943 = vsel %vm911, 1, 0
        %v944 = vsel %vm912, 1, 0
        %v945 = vsel %vm913, 1, 0
        %v946 = vsel %vm914, 1, 0
        %v947 = vsel %vm915, 1, 0
        %v948 = vsel %vm916, 1, 0
        %v949 = vsel %vm917, 1, 0
        %v950 = vsel %vm918, 1, 0
        %v951 = vsel %vm919, 1, 0
        %v952 = vsel %vm920, 1, 0
        %v953 = vsel %vm921, 1, 0
        %v954 = vsel %vm922, 1, 0
        %v955 = vsel %vm923, 1, 0
        %v956 = vcvt.s32.f32 %v924
        %v957 = vcvt.s32.f32 %v925
        %v958 = vcvt.s32.f32 %v926
        %v959 = vcvt.s32.f32 %v927
        %v960 = vcvt.s32.f32 %v928
        %v961 = vcvt.s32.f32 %v929
        %v962 = vcvt.s32.f32 %v930
        %v963 = vcvt.s32.f32 %v931
        %v964 = vcvt.s32.f32 %v932
        %v965 = vcvt.s32.f32 %v933
        %v966 = vcvt.s32.f32 %v934
        %v967 = vcvt.s32.f32 %v935
        %v968 = vcvt.s32.f32 %v936
        %v969 = vcvt.s32.f32 %v937
        %v970 = vcvt.s32.f32 %v938
        %v971 = vcvt.s32.f32 %v939
        %v972 = vcvt.s32.f32 %v940
        %v973 = vcvt.s32.f32 %v941
        %v974 = vcvt.s32.f32 %v942
        %v975 = vcvt.s32.f32 %v943
        %v976 = vcvt.s32.f32 %v944
        %v977 = vcvt.s32.f32 %v945
        %v978 = vcvt.s32.f32 %v946
        %v979 = vcvt.s32.f32 %v947
        %v980 = vcvt.s32.f32 %v948
        %v981 = vcvt.s32.f32 %v949
        %v982 = vcvt.s32.f32 %v950
        %v983 = vcvt.s32.f32 %v951
        %v984 = vcvt.s32.f32 %v952
        %v985 = vcvt.s32.f32 %v953
        %v986 = vcvt.s32.f32 %v954
        %v987 = vcvt.s32.f32 %v955
        %988 = vmatpush.msra.mxu0 %v986
        %989 = vmatpush.msra.mxu0 %v984
        %990 = vmatpush.msra.mxu0 %v982
        %991 = vmatpush.msra.mxu0 %v980
        %992 = vmatpush.msra.mxu0 %v978
        %993 = vmatpush.msra.mxu0 %v976
        %994 = vmatpush.msra.mxu0 %v974
        %995 = vmatpush.msra.mxu0 %v972
        %996 = vmatpush.msra.mxu0 %v970
        %997 = vmatpush.msra.mxu0 %v968
        %998 = vmatpush.msra.mxu0 %v966
        %999 = vmatpush.msra.mxu0 %v964
        %1000 = vmatpush.msra.mxu0 %v962
        %1001 = vmatpush.msra.mxu0 %v960
        %1002 = vmatpush.msra.mxu0 %v958
        %1003 = vmatpush.msra.mxu0 %v956
        %1004 = vmatmul.f32.gmra.mxu0 %v887
        %v1005 = vpop.f32.mrf.mxu0
        %v1006 = vadd.f32 0.0, %v1005
        %1007 = vdwg.mxu0
        %1008 = vmatpush.msra.mxu0 %v987
        %1009 = vmatpush.msra.mxu0 %v985
        %1010 = vmatpush.msra.mxu0 %v983
        %1011 = vmatpush.msra.mxu0 %v981
        %1012 = vmatpush.msra.mxu0 %v979
        %1013 = vmatpush.msra.mxu0 %v977
        %1014 = vmatpush.msra.mxu0 %v975
        %1015 = vmatpush.msra.mxu0 %v973
        %1016 = vmatpush.msra.mxu0 %v971
        %1017 = vmatpush.msra.mxu0 %v969
        %1018 = vmatpush.msra.mxu0 %v967
        %1019 = vmatpush.msra.mxu0 %v965
        %1020 = vmatpush.msra.mxu0 %v963
        %1021 = vmatpush.msra.mxu0 %v961
        %1022 = vmatpush.msra.mxu0 %v959
        %1023 = vmatpush.msra.mxu0 %v957
        %1024 = vmatmul.f32.gmra.mxu0 %v887
        %v1025 = vpop.f32.mrf.mxu0
        %v1026 = vadd.f32 0.0, %v1025
        %1027 = vdwg.mxu0
        %v1028 = vadd.f32 %v864, %v1006
        %v1029 = vadd.f32 %v884, %v1026
        %v1030 = vmul.f32 %v1028, %v600
        %v1031 = vmul.f32 %v1030, %v1029
        %1032 = vst [vmem:[%s263] sm:$0xff] %v1031
      $region44: #{_forward_impl.3} parent=35 // pred_fallthru
        _
      %p1033 = scmp.lt.s32.totalorder %s21, 7
      %s1034 = scalar_select %p1033, %s21, 7
      %s1035 = smul.addr %s1034, 8
      %s1036 = scalar_lea.vmem %s4, %s1035
      %p1037 = scmp.lt.s32.totalorder %s21, 7
      %s1038 = scalar_select %p1037, %s21, 7
      %s1039 = smul.addr %s1038, 8
      %s1040 = scalar_lea.vmem %s5, %s1039
      // Predicated region
      $region45: #{_forward_impl.3} parent=35 // pred_check
        %p1041 = pneg %p141
      $region46: #{_forward_impl.3} parent=35 // pred_check_branch
        %1043 = sbr.rel (%p1041) target = $region48
      $region47: #{_forward_impl.3} parent=35 // pred_region
        _
      $region48: #{_forward_impl.3} parent=35 // pred_fallthru
        _
      // Predicated region
      $region49: #{_forward_impl.3} parent=35 // pred_check
        %p1044 = pneg %p167
      $region50: #{_forward_impl.3} parent=35 // pred_check_branch
        %1046 = sbr.rel (%p1044) target = $region52
      $region51: #{_forward_impl.3} parent=35 // pred_region
        _
      $region52: #{_forward_impl.3} parent=35 // pred_fallthru
        _
    $region36: #{_forward_impl.3} parent=5 // pred_fallthru
      _
    %p1047 = scmp.le.s32.totalorder 2, %s12
    // Predicated region
    $region53: #{_forward_impl.3} parent=5 // pred_check
      %p1048 = pneg %p1047
    $region54: #{_forward_impl.3} parent=5 // pred_check_branch
      %1050 = sbr.rel (%p1048) target = $region56
    $region55: #{_forward_impl.3} parent=5 // pred_region
      %s1051 = ssub.s32 %s12, 2
      // Predicated region
      $region57: #{_forward_impl.3} parent=55 // pred_check
        %p1052 = pneg %p147
      $region58: #{_forward_impl.3} parent=55 // pred_check_branch
        %1054 = sbr.rel (%p1052) target = $region60
      $region59: #{_forward_impl.3} parent=55 // pred_region
        %p1055 = scmp.lt.s32.totalorder %s23, 7
        %s1056 = scalar_select %p1055, %s23, 7
        %s1057 = smul.addr %s1056, 8
        %s1058 = scalar_lea.vmem %s4, %s1057
      $region60: #{_forward_impl.3} parent=55 // pred_fallthru
        _
      // Predicated region
      $region61: #{_forward_impl.3} parent=55 // pred_check
        %p1059 = pneg %p173
      $region62: #{_forward_impl.3} parent=55 // pred_check_branch
        %1061 = sbr.rel (%p1059) target = $region64
      $region63: #{_forward_impl.3} parent=55 // pred_region
        %p1062 = scmp.lt.s32.totalorder %s23, 7
        %s1063 = scalar_select %p1062, %s23, 7
        %s1064 = smul.addr %s1063, 8
        %s1065 = scalar_lea.vmem %s5, %s1064
      $region64: #{_forward_impl.3} parent=55 // pred_fallthru
        _
    $region56: #{_forward_impl.3} parent=5 // pred_fallthru
      _
  $region6: #{_forward_impl.3} parent=0 // loop_footer
    %s16 = sadd.s32 1, %s12
  $region7: #{_forward_impl.3} parent=0 // loop_footer_branch
    %11 = sbr.rel target = $region3
  $region8: #{_forward_impl.3} parent=0 // loop_exit
    _

</llo_original>
